<compile_context>
chip_gen: v6e
topology: v6e:2x2x1
jax: 0.10.0
libtpu: 0.0.40
codegen_flags: <defaults>
</compile_context>

<pallas_src>
import jax
import jax.numpy as jnp
from jax import lax
from jax.experimental import pallas as pl
from jax.experimental.pallas import tpu as pltpu

EPS = 1e-5


# ----------------------------------------------------------------------------
# Fused LSTM + classifier-head kernel (single invocation, everything in VMEM).
# ----------------------------------------------------------------------------
def fused_rnn_kernel(x_ref, wih_ref, whh_ref, bias_ref,
                     w1_ref, b1_ref, w2_ref, b2_ref, out_ref):
    """One-shot LSTM recurrence + MLP head.

    x_ref   : (T*Bp, F)  time-major flattened features (row = t*Bp + b), Bp = 8-padded batch
    wih_ref : (F, 4H)    input->gate weights (numeric BN + 0.5 i/f/o prescale folded in)
    whh_ref : (4H, 4H)   recurrent weights; only rows [H, 2H) nonzero; i/f/o cols prescaled 0.5
    bias_ref: (1, 4H)    b_ih + b_hh + numeric-BN shift, i/f/o entries prescaled 0.5
    w1_ref  : (4H, H)    BN1-folded linear_one weights; only rows [H, 2H) nonzero
    b1_ref  : (1, H)
    w2_ref  : (H, 128)   BN2-folded linear_two weights, zero-padded to 128 lanes
    b2_ref  : (1, 128)
    out_ref : (Bp, 128)  lane-dense logits slab; real logits live in [:, :2]
    """
    TB = x_ref.shape[0]
    H4 = whh_ref.shape[1]
    H = H4 // 4
    B = out_ref.shape[0]
    T = TB // B

    # ---- hoisted input projection: ONE MXU matmul for all time steps --------
    gx = (jnp.dot(x_ref[...], wih_ref[...], preferred_element_type=jnp.float32)
          + bias_ref[...])                                   # (T*Bp, 4H); bias hoisted
    whh = whh_ref[...]                                       # hoisted weight read

    # Lane mask selecting the cell-candidate gate 'g'; other lanes (i/f/o) were
    # pre-scaled by 0.5 offline so sigmoid(z) == 0.5*tanh(z) + 0.5 here.
    lane = lax.broadcasted_iota(jnp.int32, (B, H4), 1)
    g_mask = (lane >= 2 * H) & (lane < 3 * H)

    # Wide state: h_w / c_w are (Bp, 4H); the real h / c live in lanes [H, 2H).
    # Other lanes carry bounded junk (|.| grows at most linearly in T) that is
    # annihilated by the zero rows of whh / w1.  Gate column order is (i,f,g,o).
    h_w = jnp.zeros((B, H4), jnp.float32)
    c_w = jnp.zeros((B, H4), jnp.float32)

    # T is small & static -> Python-unrolled loop: every gx slice below is a
    # compile-time-constant, sublane-aligned single-vreg slice (Bp == 8 rows),
    # so no scratch buffer and no masked vld/vst; only h_w @ whh sits on the
    # serial dependency chain.
    for t in range(T):
        gx_t = gx[t * B:(t + 1) * B, :]                      # static slice, 1 vreg
        gates = gx_t + jnp.dot(h_w, whh, preferred_element_type=jnp.float32)
        y = jnp.tanh(gates)                                  # single EUP transcendental
        act = jnp.where(g_mask, y, 0.5 * y + 0.5)            # [i|f|g|o] (i/f/o = sigmoid)
        # Three INDEPENDENT XLU rotations (issue back-to-back, overlap with VPU).
        # r1/r3 hold i and g (in some roll-direction-dependent order) at lanes
        # [H,2H); their product is i*g either way.  r2 holds o there (2H roll in
        # a 4H-periodic layout is direction-free).
        r1 = pltpu.roll(act, H, axis=1)
        r2 = pltpu.roll(act, 2 * H, axis=1)
        r3 = pltpu.roll(act, 3 * H, axis=1)
        ig = r1 * r3                                         # lanes [H,2H): i*g
        c_w = act * c_w + ig                                 # lanes [H,2H): f*c + i*g
        h_w = r2 * jnp.tanh(c_w)                             # lanes [H,2H): o*tanh(c_new)

    # ---- fused classifier head (BN1/BN2 folded into weights; dropout p=0) ---
    x1 = jnp.dot(h_w, w1_ref[...], preferred_element_type=jnp.float32) + b1_ref[...]
    x1 = jnp.maximum(x1, 0.0)
    out_ref[...] = (jnp.dot(x1, w2_ref[...], preferred_element_type=jnp.float32)
                    + b2_ref[...]).astype(out_ref.dtype)     # lane-dense unmasked store


def rnn_forward(x_tm, w_ih_fold, w_hh_pad, b_gates, w1_pad, b1_fold,
                w2_pad, b2_pad, *, batch_pad):
    vmem = pl.BlockSpec(memory_space=pltpu.MemorySpace.VMEM)
    out_lanes = w2_pad.shape[1]
    return pl.pallas_call(
        fused_rnn_kernel,
        out_shape=jax.ShapeDtypeStruct((batch_pad, out_lanes), jnp.float32),
        in_specs=[vmem] * 8,
        out_specs=vmem,
    )(x_tm, w_ih_fold, w_hh_pad, b_gates, w1_pad, b1_fold, w2_pad, b2_pad)


# ----------------------------------------------------------------------------
# Pure-JAX reference (unfused, unfolded parameters) for correctness check.
# ----------------------------------------------------------------------------
def ref_forward(cat_ids, num_raw, emb_table, bn_num, lstm_p, bn1, lin1, bn2, lin2):
    bn_g, bn_b, bn_m, bn_v = bn_num
    w_ih, w_hh, b_ih, b_hh = lstm_p
    B, T, _ = num_raw.shape
    H = w_hh.shape[0]

    cat_emb = emb_table[cat_ids].reshape(B, T, -1)
    num_bn = (num_raw - bn_m) * lax.rsqrt(bn_v + EPS) * bn_g + bn_b
    feats = jnp.concatenate([num_bn, cat_emb], axis=-1)          # (B, T, F)
    x_tbf = jnp.transpose(feats, (1, 0, 2))                      # (T, B, F)

    def step(carry, x_t):
        h, c = carry
        g = x_t @ w_ih + h @ w_hh + (b_ih + b_hh)
        i_g = jax.nn.sigmoid(g[:, 0:H])
        f_g = jax.nn.sigmoid(g[:, H:2 * H])
        g_g = jnp.tanh(g[:, 2 * H:3 * H])
        o_g = jax.nn.sigmoid(g[:, 3 * H:4 * H])
        c = f_g * c + i_g * g_g
        h = o_g * jnp.tanh(c)
        return (h, c), None

    (h, _), _ = lax.scan(step, (jnp.zeros((B, H)), jnp.zeros((B, H))), x_tbf)

    g1, bb1, m1, v1 = bn1
    w1, b1 = lin1
    g2, bb2, m2, v2 = bn2
    w2, b2 = lin2
    x = (h - m1) * lax.rsqrt(v1 + EPS) * g1 + bb1
    x = jnp.maximum(x @ w1 + b1, 0.0)            # dropout p = 0 (n_lstm_layer == 1)
    x = (x - m2) * lax.rsqrt(v2 + EPS) * g2 + bb2
    return x @ w2 + b2


# ----------------------------------------------------------------------------
if __name__ == "__main__":
    # Module hyper-parameters (small, consistent with the forward pass).
    num_uniq_embeddings = 50
    embedding_dim = 4
    n_cat_cols = 3
    n_numerical_col = 4
    feature_dim = n_numerical_col + n_cat_cols * embedding_dim   # 16
    hidden_dim = 32                                              # H ; 4H = 128
    B, T = 2, 8
    H = hidden_dim

    key = jax.random.PRNGKey(0)
    ks = jax.random.split(key, 16)

    # ---- inputs: (cat, num); equal lengths -> pad_sequence == stack ---------
    cat_ids = jax.random.randint(ks[0], (B, T, n_cat_cols), 0, num_uniq_embeddings)
    num_raw = jax.random.normal(ks[1], (B, T, n_numerical_col), jnp.float32)

    # ---- parameters (deterministic) -----------------------------------------
    emb_table = 0.1 * jax.random.normal(
        ks[2], (num_uniq_embeddings, embedding_dim), jnp.float32)

    # BatchNorm1d(n_numerical_col), eval-mode running stats
    bn_num_g = 1.0 + 0.1 * jax.random.normal(ks[3], (n_numerical_col,))
    bn_num_b = 0.1 * jax.random.normal(ks[4], (n_numerical_col,))
    bn_num_m = 0.05 * jax.random.normal(ks[5], (n_numerical_col,))
    bn_num_v = 0.5 + jnp.abs(jax.random.normal(ks[6], (n_numerical_col,)))

    # LSTM (single layer, unidirectional); weights stored transposed vs PyTorch:
    # W_ih -> (F, 4H), W_hh -> (H, 4H); gate order (i, f, g, o).
    k_lstm = 1.0 / jnp.sqrt(hidden_dim)
    w_ih = k_lstm * jax.random.normal(ks[7], (feature_dim, 4 * H))
    w_hh = k_lstm * jax.random.normal(ks[8], (H, 4 * H))
    b_ih = k_lstm * jax.random.normal(ks[9], (4 * H,))
    b_hh = k_lstm * jax.random.normal(ks[10], (4 * H,))

    # Head: BN1, Linear1, BN2, Linear2 (eval-mode BN stats).
    bn1_g = 1.0 + 0.1 * jax.random.normal(ks[11], (H,))
    bn1_b = 0.1 * jax.random.normal(ks[12], (H,))
    bn1_m = 0.02 * jnp.arange(H, dtype=jnp.float32)
    bn1_v = 0.5 + 0.01 * jnp.arange(H, dtype=jnp.float32)
    w1 = (1.0 / jnp.sqrt(H)) * jax.random.normal(ks[13], (H, H))
    b1 = 0.1 * jax.random.normal(ks[14], (H,))
    bn2_g = jnp.ones((H,), jnp.float32)
    bn2_b = jnp.zeros((H,), jnp.float32)
    bn2_m = 0.01 * jnp.arange(H, dtype=jnp.float32)
    bn2_v = 1.0 + 0.02 * jnp.arange(H, dtype=jnp.float32)
    w2 = (1.0 / jnp.sqrt(H)) * jax.random.normal(ks[15], (H, 2))
    b2 = jnp.array([0.05, -0.05], jnp.float32)

    # ---- glue: embedding gather + concat (raw numerics; BN folded below) ----
    cat_emb = emb_table[cat_ids].reshape(B, T, n_cat_cols * embedding_dim)
    feats_raw = jnp.concatenate([num_raw, cat_emb], axis=-1)       # (B, T, F)

    # Pad batch to one full sublane group (2 -> 8); padded rows are discarded.
    B_PAD = 8
    x_tbf = jnp.transpose(feats_raw, (1, 0, 2)).astype(jnp.float32)   # (T, B, F)
    x_pad = jnp.zeros((T, B_PAD, feature_dim), jnp.float32).at[:, :B, :].set(x_tbf)
    x_tm = x_pad.reshape(T * B_PAD, feature_dim)                      # (T*Bp, F)

    # ---- fold eval-mode BatchNorm (numeric) into W_ih / gate bias (offline) -
    s_num = bn_num_g * lax.rsqrt(bn_num_v + EPS)
    t_num = bn_num_b - bn_num_m * s_num
    w_ih_fold = w_ih.at[:n_numerical_col].set(w_ih[:n_numerical_col] * s_num[:, None])
    b_gates = b_ih + b_hh + t_num @ w_ih[:n_numerical_col]

    # ---- half-angle fold: sigmoid(z) = 0.5*(1 + tanh(z/2)) -------------------
    # Pre-scale ONLY the i/f/o gate columns (not g) of W_ih, W_hh and the bias
    # by 0.5 so the kernel needs a single tanh per step for all four gates.
    col = jnp.arange(4 * H)
    half = jnp.where((col >= 2 * H) & (col < 3 * H), 1.0, 0.5).astype(jnp.float32)
    w_ih_fold = (w_ih_fold * half[None, :]).astype(jnp.float32)
    w_hh_half = (w_hh * half[None, :]).astype(jnp.float32)
    b_gates = (b_gates * half).reshape(1, 4 * H).astype(jnp.float32)

    # ---- fold head BatchNorms into the Linear layers (offline) --------------
    s1 = bn1_g * lax.rsqrt(bn1_v + EPS)
    t1 = bn1_b - bn1_m * s1
    w1_fold = (s1[:, None] * w1).astype(jnp.float32)
    b1_fold = (b1 + t1 @ w1).reshape(1, H).astype(jnp.float32)

    s2 = bn2_g * lax.rsqrt(bn2_v + EPS)
    t2 = bn2_b - bn2_m * s2
    w2_fold = (s2[:, None] * w2).astype(jnp.float32)
    b2_fold = (b2 + t2 @ w2).astype(jnp.float32)

    # ---- zero-pad recurrent / head weights for the wide (Bp, 4H) state ------
    w_hh_pad = jnp.zeros((4 * H, 4 * H), jnp.float32).at[H:2 * H].set(w_hh_half)
    w1_pad = jnp.zeros((4 * H, H), jnp.float32).at[H:2 * H].set(w1_fold)

    # ---- lane-dense output: pad the 2 logits to a full 128-lane slab --------
    OUT_LANES = 128
    w2_pad = jnp.zeros((H, OUT_LANES), jnp.float32).at[:, :2].set(w2_fold)
    b2_pad = jnp.zeros((1, OUT_LANES), jnp.float32).at[:, :2].set(b2_fold.reshape(1, 2))

    # ---- run the fused Pallas kernel ----------------------------------------
    out_slab = rnn_forward(x_tm, w_ih_fold, w_hh_pad, b_gates, w1_pad, b1_fold,
                           w2_pad, b2_pad, batch_pad=B_PAD)
    out_slab = jax.block_until_ready(out_slab)
    logits = out_slab[:B, :2]                                  # drop pad rows / lanes

    # ---- verify against the pure-JAX reference (unfolded params) ------------
    ref = ref_forward(
        cat_ids, num_raw, emb_table,
        (bn_num_g, bn_num_b, bn_num_m, bn_num_v),
        (w_ih, w_hh, b_ih, b_hh),
        (bn1_g, bn1_b, bn1_m, bn1_v), (w1, b1),
        (bn2_g, bn2_b, bn2_m, bn2_v), (w2, b2))

    assert logits.shape == (B, 2)
    assert jnp.allclose(logits, ref, rtol=1e-4, atol=1e-4), (logits, ref)

    print("KERNEL_OK")
</pallas_src>

<mosaic_0001>
module attributes {stable_mosaic.version = 11 : i64} {
  func.func @fused_rnn_kernel(%arg0: memref<64x16xf32, #tpu.memory_space<vmem>>, %arg1: memref<16x128xf32, #tpu.memory_space<vmem>>, %arg2: memref<128x128xf32, #tpu.memory_space<vmem>>, %arg3: memref<1x128xf32, #tpu.memory_space<vmem>>, %arg4: memref<128x32xf32, #tpu.memory_space<vmem>>, %arg5: memref<1x32xf32, #tpu.memory_space<vmem>>, %arg6: memref<32x128xf32, #tpu.memory_space<vmem>>, %arg7: memref<1x128xf32, #tpu.memory_space<vmem>>, %arg8: memref<8x128xf32, #tpu.memory_space<vmem>>) attributes {dimension_semantics = [], scalar_prefetch = 0 : i64, scratch_operands = 0 : i64, tpu.core_type = #tpu.core_type<tc>} {
    %c0 = arith.constant 0 : index
    %c0_0 = arith.constant 0 : index
    %0 = vector.load %arg0[%c0, %c0_0] : memref<64x16xf32, #tpu.memory_space<vmem>>, vector<64x16xf32>
    %c0_1 = arith.constant 0 : index
    %c0_2 = arith.constant 0 : index
    %1 = vector.load %arg1[%c0_1, %c0_2] : memref<16x128xf32, #tpu.memory_space<vmem>>, vector<16x128xf32>
    %cst = arith.constant dense<0.000000e+00> : vector<64x128xf32>
    %2 = tpu.matmul %0, %1, %cst {dimension_numbers = #tpu.dot_dimension_numbers<[1], [0], [0], [1], [0, 0, 1, 1], [], []>} : vector<64x16xf32>, vector<16x128xf32>, vector<64x128xf32> -> vector<64x128xf32>
    %c0_3 = arith.constant 0 : index
    %c0_4 = arith.constant 0 : index
    %3 = vector.load %arg3[%c0_3, %c0_4] : memref<1x128xf32, #tpu.memory_space<vmem>>, vector<1x128xf32>
    %4 = vector.broadcast %3 : vector<1x128xf32> to vector<64x128xf32>
    %5 = arith.addf %2, %4 : vector<64x128xf32>
    %c0_5 = arith.constant 0 : index
    %c0_6 = arith.constant 0 : index
    %6 = vector.load %arg2[%c0_5, %c0_6] : memref<128x128xf32, #tpu.memory_space<vmem>>, vector<128x128xf32>
    %7 = tpu.iota {dimensions = array<i32: 1>} : vector<8x128xi32>
    %c64_i32 = arith.constant 64 : i32
    %8 = vector.broadcast %c64_i32 : i32 to vector<8x128xi32>
    %9 = arith.cmpi sge, %7, %8 : vector<8x128xi32>
    %c96_i32 = arith.constant 96 : i32
    %10 = vector.broadcast %c96_i32 : i32 to vector<8x128xi32>
    %11 = arith.cmpi slt, %7, %10 : vector<8x128xi32>
    %12 = arith.andi %9, %11 : vector<8x128xi1>
    %cst_7 = arith.constant 0.000000e+00 : f32
    %13 = vector.broadcast %cst_7 : f32 to vector<8x128xf32>
    %cst_8 = arith.constant 0.000000e+00 : f32
    %14 = vector.broadcast %cst_8 : f32 to vector<8x128xf32>
    %15 = vector.extract_strided_slice %5 {offsets = [0, 0], sizes = [8, 128], strides = [1, 1]} : vector<64x128xf32> to vector<8x128xf32>
    %cst_9 = arith.constant dense<0.000000e+00> : vector<8x128xf32>
    %16 = tpu.matmul %13, %6, %cst_9 {dimension_numbers = #tpu.dot_dimension_numbers<[1], [0], [0], [1], [0, 0, 1, 1], [], []>} : vector<8x128xf32>, vector<128x128xf32>, vector<8x128xf32> -> vector<8x128xf32>
    %17 = arith.addf %15, %16 : vector<8x128xf32>
    %18 = math.tanh %17 : vector<8x128xf32>
    %cst_10 = arith.constant 5.000000e-01 : f32
    %19 = vector.broadcast %cst_10 : f32 to vector<8x128xf32>
    %20 = arith.mulf %19, %18 : vector<8x128xf32>
    %cst_11 = arith.constant 5.000000e-01 : f32
    %21 = vector.broadcast %cst_11 : f32 to vector<8x128xf32>
    %22 = arith.addf %20, %21 : vector<8x128xf32>
    %23 = arith.select %12, %18, %22 : vector<8x128xi1>, vector<8x128xf32>
    %c32_i32 = arith.constant 32 : i32
    %24 = tpu.dynamic_rotate %23 by %c32_i32 dim 1 : vector<8x128xf32>, i32 -> vector<8x128xf32>
    %c64_i32_12 = arith.constant 64 : i32
    %25 = tpu.dynamic_rotate %23 by %c64_i32_12 dim 1 : vector<8x128xf32>, i32 -> vector<8x128xf32>
    %c96_i32_13 = arith.constant 96 : i32
    %26 = tpu.dynamic_rotate %23 by %c96_i32_13 dim 1 : vector<8x128xf32>, i32 -> vector<8x128xf32>
    %27 = arith.mulf %24, %26 : vector<8x128xf32>
    %28 = arith.mulf %23, %14 : vector<8x128xf32>
    %29 = arith.addf %28, %27 : vector<8x128xf32>
    %30 = math.tanh %29 : vector<8x128xf32>
    %31 = arith.mulf %25, %30 : vector<8x128xf32>
    %32 = vector.extract_strided_slice %5 {offsets = [8, 0], sizes = [8, 128], strides = [1, 1]} : vector<64x128xf32> to vector<8x128xf32>
    %cst_14 = arith.constant dense<0.000000e+00> : vector<8x128xf32>
    %33 = tpu.matmul %31, %6, %cst_14 {dimension_numbers = #tpu.dot_dimension_numbers<[1], [0], [0], [1], [0, 0, 1, 1], [], []>} : vector<8x128xf32>, vector<128x128xf32>, vector<8x128xf32> -> vector<8x128xf32>
    %34 = arith.addf %32, %33 : vector<8x128xf32>
    %35 = math.tanh %34 : vector<8x128xf32>
    %cst_15 = arith.constant 5.000000e-01 : f32
    %36 = vector.broadcast %cst_15 : f32 to vector<8x128xf32>
    %37 = arith.mulf %36, %35 : vector<8x128xf32>
    %cst_16 = arith.constant 5.000000e-01 : f32
    %38 = vector.broadcast %cst_16 : f32 to vector<8x128xf32>
    %39 = arith.addf %37, %38 : vector<8x128xf32>
    %40 = arith.select %12, %35, %39 : vector<8x128xi1>, vector<8x128xf32>
    %c32_i32_17 = arith.constant 32 : i32
    %41 = tpu.dynamic_rotate %40 by %c32_i32_17 dim 1 : vector<8x128xf32>, i32 -> vector<8x128xf32>
    %c64_i32_18 = arith.constant 64 : i32
    %42 = tpu.dynamic_rotate %40 by %c64_i32_18 dim 1 : vector<8x128xf32>, i32 -> vector<8x128xf32>
    %c96_i32_19 = arith.constant 96 : i32
    %43 = tpu.dynamic_rotate %40 by %c96_i32_19 dim 1 : vector<8x128xf32>, i32 -> vector<8x128xf32>
    %44 = arith.mulf %41, %43 : vector<8x128xf32>
    %45 = arith.mulf %40, %29 : vector<8x128xf32>
    %46 = arith.addf %45, %44 : vector<8x128xf32>
    %47 = math.tanh %46 : vector<8x128xf32>
    %48 = arith.mulf %42, %47 : vector<8x128xf32>
    %49 = vector.extract_strided_slice %5 {offsets = [16, 0], sizes = [8, 128], strides = [1, 1]} : vector<64x128xf32> to vector<8x128xf32>
    %cst_20 = arith.constant dense<0.000000e+00> : vector<8x128xf32>
    %50 = tpu.matmul %48, %6, %cst_20 {dimension_numbers = #tpu.dot_dimension_numbers<[1], [0], [0], [1], [0, 0, 1, 1], [], []>} : vector<8x128xf32>, vector<128x128xf32>, vector<8x128xf32> -> vector<8x128xf32>
    %51 = arith.addf %49, %50 : vector<8x128xf32>
    %52 = math.tanh %51 : vector<8x128xf32>
    %cst_21 = arith.constant 5.000000e-01 : f32
    %53 = vector.broadcast %cst_21 : f32 to vector<8x128xf32>
    %54 = arith.mulf %53, %52 : vector<8x128xf32>
    %cst_22 = arith.constant 5.000000e-01 : f32
    %55 = vector.broadcast %cst_22 : f32 to vector<8x128xf32>
    %56 = arith.addf %54, %55 : vector<8x128xf32>
    %57 = arith.select %12, %52, %56 : vector<8x128xi1>, vector<8x128xf32>
    %c32_i32_23 = arith.constant 32 : i32
    %58 = tpu.dynamic_rotate %57 by %c32_i32_23 dim 1 : vector<8x128xf32>, i32 -> vector<8x128xf32>
    %c64_i32_24 = arith.constant 64 : i32
    %59 = tpu.dynamic_rotate %57 by %c64_i32_24 dim 1 : vector<8x128xf32>, i32 -> vector<8x128xf32>
    %c96_i32_25 = arith.constant 96 : i32
    %60 = tpu.dynamic_rotate %57 by %c96_i32_25 dim 1 : vector<8x128xf32>, i32 -> vector<8x128xf32>
    %61 = arith.mulf %58, %60 : vector<8x128xf32>
    %62 = arith.mulf %57, %46 : vector<8x128xf32>
    %63 = arith.addf %62, %61 : vector<8x128xf32>
    %64 = math.tanh %63 : vector<8x128xf32>
    %65 = arith.mulf %59, %64 : vector<8x128xf32>
    %66 = vector.extract_strided_slice %5 {offsets = [24, 0], sizes = [8, 128], strides = [1, 1]} : vector<64x128xf32> to vector<8x128xf32>
    %cst_26 = arith.constant dense<0.000000e+00> : vector<8x128xf32>
    %67 = tpu.matmul %65, %6, %cst_26 {dimension_numbers = #tpu.dot_dimension_numbers<[1], [0], [0], [1], [0, 0, 1, 1], [], []>} : vector<8x128xf32>, vector<128x128xf32>, vector<8x128xf32> -> vector<8x128xf32>
    %68 = arith.addf %66, %67 : vector<8x128xf32>
    %69 = math.tanh %68 : vector<8x128xf32>
    %cst_27 = arith.constant 5.000000e-01 : f32
    %70 = vector.broadcast %cst_27 : f32 to vector<8x128xf32>
    %71 = arith.mulf %70, %69 : vector<8x128xf32>
    %cst_28 = arith.constant 5.000000e-01 : f32
    %72 = vector.broadcast %cst_28 : f32 to vector<8x128xf32>
    %73 = arith.addf %71, %72 : vector<8x128xf32>
    %74 = arith.select %12, %69, %73 : vector<8x128xi1>, vector<8x128xf32>
    %c32_i32_29 = arith.constant 32 : i32
    %75 = tpu.dynamic_rotate %74 by %c32_i32_29 dim 1 : vector<8x128xf32>, i32 -> vector<8x128xf32>
    %c64_i32_30 = arith.constant 64 : i32
    %76 = tpu.dynamic_rotate %74 by %c64_i32_30 dim 1 : vector<8x128xf32>, i32 -> vector<8x128xf32>
    %c96_i32_31 = arith.constant 96 : i32
    %77 = tpu.dynamic_rotate %74 by %c96_i32_31 dim 1 : vector<8x128xf32>, i32 -> vector<8x128xf32>
    %78 = arith.mulf %75, %77 : vector<8x128xf32>
    %79 = arith.mulf %74, %63 : vector<8x128xf32>
    %80 = arith.addf %79, %78 : vector<8x128xf32>
    %81 = math.tanh %80 : vector<8x128xf32>
    %82 = arith.mulf %76, %81 : vector<8x128xf32>
    %83 = vector.extract_strided_slice %5 {offsets = [32, 0], sizes = [8, 128], strides = [1, 1]} : vector<64x128xf32> to vector<8x128xf32>
    %cst_32 = arith.constant dense<0.000000e+00> : vector<8x128xf32>
    %84 = tpu.matmul %82, %6, %cst_32 {dimension_numbers = #tpu.dot_dimension_numbers<[1], [0], [0], [1], [0, 0, 1, 1], [], []>} : vector<8x128xf32>, vector<128x128xf32>, vector<8x128xf32> -> vector<8x128xf32>
    %85 = arith.addf %83, %84 : vector<8x128xf32>
    %86 = math.tanh %85 : vector<8x128xf32>
    %cst_33 = arith.constant 5.000000e-01 : f32
    %87 = vector.broadcast %cst_33 : f32 to vector<8x128xf32>
    %88 = arith.mulf %87, %86 : vector<8x128xf32>
    %cst_34 = arith.constant 5.000000e-01 : f32
    %89 = vector.broadcast %cst_34 : f32 to vector<8x128xf32>
    %90 = arith.addf %88, %89 : vector<8x128xf32>
    %91 = arith.select %12, %86, %90 : vector<8x128xi1>, vector<8x128xf32>
    %c32_i32_35 = arith.constant 32 : i32
    %92 = tpu.dynamic_rotate %91 by %c32_i32_35 dim 1 : vector<8x128xf32>, i32 -> vector<8x128xf32>
    %c64_i32_36 = arith.constant 64 : i32
    %93 = tpu.dynamic_rotate %91 by %c64_i32_36 dim 1 : vector<8x128xf32>, i32 -> vector<8x128xf32>
    %c96_i32_37 = arith.constant 96 : i32
    %94 = tpu.dynamic_rotate %91 by %c96_i32_37 dim 1 : vector<8x128xf32>, i32 -> vector<8x128xf32>
    %95 = arith.mulf %92, %94 : vector<8x128xf32>
    %96 = arith.mulf %91, %80 : vector<8x128xf32>
    %97 = arith.addf %96, %95 : vector<8x128xf32>
    %98 = math.tanh %97 : vector<8x128xf32>
    %99 = arith.mulf %93, %98 : vector<8x128xf32>
    %100 = vector.extract_strided_slice %5 {offsets = [40, 0], sizes = [8, 128], strides = [1, 1]} : vector<64x128xf32> to vector<8x128xf32>
    %cst_38 = arith.constant dense<0.000000e+00> : vector<8x128xf32>
    %101 = tpu.matmul %99, %6, %cst_38 {dimension_numbers = #tpu.dot_dimension_numbers<[1], [0], [0], [1], [0, 0, 1, 1], [], []>} : vector<8x128xf32>, vector<128x128xf32>, vector<8x128xf32> -> vector<8x128xf32>
    %102 = arith.addf %100, %101 : vector<8x128xf32>
    %103 = math.tanh %102 : vector<8x128xf32>
    %cst_39 = arith.constant 5.000000e-01 : f32
    %104 = vector.broadcast %cst_39 : f32 to vector<8x128xf32>
    %105 = arith.mulf %104, %103 : vector<8x128xf32>
    %cst_40 = arith.constant 5.000000e-01 : f32
    %106 = vector.broadcast %cst_40 : f32 to vector<8x128xf32>
    %107 = arith.addf %105, %106 : vector<8x128xf32>
    %108 = arith.select %12, %103, %107 : vector<8x128xi1>, vector<8x128xf32>
    %c32_i32_41 = arith.constant 32 : i32
    %109 = tpu.dynamic_rotate %108 by %c32_i32_41 dim 1 : vector<8x128xf32>, i32 -> vector<8x128xf32>
    %c64_i32_42 = arith.constant 64 : i32
    %110 = tpu.dynamic_rotate %108 by %c64_i32_42 dim 1 : vector<8x128xf32>, i32 -> vector<8x128xf32>
    %c96_i32_43 = arith.constant 96 : i32
    %111 = tpu.dynamic_rotate %108 by %c96_i32_43 dim 1 : vector<8x128xf32>, i32 -> vector<8x128xf32>
    %112 = arith.mulf %109, %111 : vector<8x128xf32>
    %113 = arith.mulf %108, %97 : vector<8x128xf32>
    %114 = arith.addf %113, %112 : vector<8x128xf32>
    %115 = math.tanh %114 : vector<8x128xf32>
    %116 = arith.mulf %110, %115 : vector<8x128xf32>
    %117 = vector.extract_strided_slice %5 {offsets = [48, 0], sizes = [8, 128], strides = [1, 1]} : vector<64x128xf32> to vector<8x128xf32>
    %cst_44 = arith.constant dense<0.000000e+00> : vector<8x128xf32>
    %118 = tpu.matmul %116, %6, %cst_44 {dimension_numbers = #tpu.dot_dimension_numbers<[1], [0], [0], [1], [0, 0, 1, 1], [], []>} : vector<8x128xf32>, vector<128x128xf32>, vector<8x128xf32> -> vector<8x128xf32>
    %119 = arith.addf %117, %118 : vector<8x128xf32>
    %120 = math.tanh %119 : vector<8x128xf32>
    %cst_45 = arith.constant 5.000000e-01 : f32
    %121 = vector.broadcast %cst_45 : f32 to vector<8x128xf32>
    %122 = arith.mulf %121, %120 : vector<8x128xf32>
    %cst_46 = arith.constant 5.000000e-01 : f32
    %123 = vector.broadcast %cst_46 : f32 to vector<8x128xf32>
    %124 = arith.addf %122, %123 : vector<8x128xf32>
    %125 = arith.select %12, %120, %124 : vector<8x128xi1>, vector<8x128xf32>
    %c32_i32_47 = arith.constant 32 : i32
    %126 = tpu.dynamic_rotate %125 by %c32_i32_47 dim 1 : vector<8x128xf32>, i32 -> vector<8x128xf32>
    %c64_i32_48 = arith.constant 64 : i32
    %127 = tpu.dynamic_rotate %125 by %c64_i32_48 dim 1 : vector<8x128xf32>, i32 -> vector<8x128xf32>
    %c96_i32_49 = arith.constant 96 : i32
    %128 = tpu.dynamic_rotate %125 by %c96_i32_49 dim 1 : vector<8x128xf32>, i32 -> vector<8x128xf32>
    %129 = arith.mulf %126, %128 : vector<8x128xf32>
    %130 = arith.mulf %125, %114 : vector<8x128xf32>
    %131 = arith.addf %130, %129 : vector<8x128xf32>
    %132 = math.tanh %131 : vector<8x128xf32>
    %133 = arith.mulf %127, %132 : vector<8x128xf32>
    %134 = vector.extract_strided_slice %5 {offsets = [56, 0], sizes = [8, 128], strides = [1, 1]} : vector<64x128xf32> to vector<8x128xf32>
    %cst_50 = arith.constant dense<0.000000e+00> : vector<8x128xf32>
    %135 = tpu.matmul %133, %6, %cst_50 {dimension_numbers = #tpu.dot_dimension_numbers<[1], [0], [0], [1], [0, 0, 1, 1], [], []>} : vector<8x128xf32>, vector<128x128xf32>, vector<8x128xf32> -> vector<8x128xf32>
    %136 = arith.addf %134, %135 : vector<8x128xf32>
    %137 = math.tanh %136 : vector<8x128xf32>
    %cst_51 = arith.constant 5.000000e-01 : f32
    %138 = vector.broadcast %cst_51 : f32 to vector<8x128xf32>
    %139 = arith.mulf %138, %137 : vector<8x128xf32>
    %cst_52 = arith.constant 5.000000e-01 : f32
    %140 = vector.broadcast %cst_52 : f32 to vector<8x128xf32>
    %141 = arith.addf %139, %140 : vector<8x128xf32>
    %142 = arith.select %12, %137, %141 : vector<8x128xi1>, vector<8x128xf32>
    %c32_i32_53 = arith.constant 32 : i32
    %143 = tpu.dynamic_rotate %142 by %c32_i32_53 dim 1 : vector<8x128xf32>, i32 -> vector<8x128xf32>
    %c64_i32_54 = arith.constant 64 : i32
    %144 = tpu.dynamic_rotate %142 by %c64_i32_54 dim 1 : vector<8x128xf32>, i32 -> vector<8x128xf32>
    %c96_i32_55 = arith.constant 96 : i32
    %145 = tpu.dynamic_rotate %142 by %c96_i32_55 dim 1 : vector<8x128xf32>, i32 -> vector<8x128xf32>
    %146 = arith.mulf %143, %145 : vector<8x128xf32>
    %147 = arith.mulf %142, %131 : vector<8x128xf32>
    %148 = arith.addf %147, %146 : vector<8x128xf32>
    %149 = math.tanh %148 : vector<8x128xf32>
    %150 = arith.mulf %144, %149 : vector<8x128xf32>
    %c0_56 = arith.constant 0 : index
    %c0_57 = arith.constant 0 : index
    %151 = vector.load %arg4[%c0_56, %c0_57] : memref<128x32xf32, #tpu.memory_space<vmem>>, vector<128x32xf32>
    %cst_58 = arith.constant dense<0.000000e+00> : vector<8x32xf32>
    %152 = tpu.matmul %150, %151, %cst_58 {dimension_numbers = #tpu.dot_dimension_numbers<[1], [0], [0], [1], [0, 0, 1, 1], [], []>} : vector<8x128xf32>, vector<128x32xf32>, vector<8x32xf32> -> vector<8x32xf32>
    %c0_59 = arith.constant 0 : index
    %c0_60 = arith.constant 0 : index
    %153 = vector.load %arg5[%c0_59, %c0_60] : memref<1x32xf32, #tpu.memory_space<vmem>>, vector<1x32xf32>
    %154 = vector.broadcast %153 : vector<1x32xf32> to vector<8x32xf32>
    %155 = arith.addf %152, %154 : vector<8x32xf32>
    %cst_61 = arith.constant 0.000000e+00 : f32
    %156 = vector.broadcast %cst_61 : f32 to vector<8x32xf32>
    %157 = arith.maximumf %155, %156 : vector<8x32xf32>
    %c0_62 = arith.constant 0 : index
    %c0_63 = arith.constant 0 : index
    %158 = vector.load %arg6[%c0_62, %c0_63] : memref<32x128xf32, #tpu.memory_space<vmem>>, vector<32x128xf32>
    %cst_64 = arith.constant dense<0.000000e+00> : vector<8x128xf32>
    %159 = tpu.matmul %157, %158, %cst_64 {dimension_numbers = #tpu.dot_dimension_numbers<[1], [0], [0], [1], [0, 0, 1, 1], [], []>} : vector<8x32xf32>, vector<32x128xf32>, vector<8x128xf32> -> vector<8x128xf32>
    %c0_65 = arith.constant 0 : index
    %c0_66 = arith.constant 0 : index
    %160 = vector.load %arg7[%c0_65, %c0_66] : memref<1x128xf32, #tpu.memory_space<vmem>>, vector<1x128xf32>
    %161 = vector.broadcast %160 : vector<1x128xf32> to vector<8x128xf32>
    %162 = arith.addf %159, %161 : vector<8x128xf32>
    %c0_67 = arith.constant 0 : index
    %c0_68 = arith.constant 0 : index
    %163 = vector.load %arg8[%c0_67, %c0_68] : memref<8x128xf32, #tpu.memory_space<vmem>>, vector<8x128xf32>
    tpu.vector_store %arg8[%c0_67, %c0_68], %162 {strides = array<i32>} : memref<8x128xf32, #tpu.memory_space<vmem>>, vector<8x128xf32>,
    return
  }
}

</mosaic_0001>

<llo_original>
// kernel: tpu_custom_call.1
$region0: #{tpu_custom_call.1}
  #allocation0 [shape = 'u32[]', space=smem, size = 0x4, offset = 0x4, fixed_abs, tag = 'smem constant byte address 0x4 - core index']
  #allocation1 [shape = 'u32[144,128]{1,0:T(1,128)}', space=vmem, size = 0x12000, scoped, tag = 'internal scratch']
  %s0 = inlined_call_operand.vmem [shape: f32[64,16], index: 0, kind: input, shape index: {}]
  %s1 = inlined_call_operand.vmem [shape: f32[16,128], index: 1, kind: input, shape index: {}]
  %s2 = inlined_call_operand.vmem [shape: f32[128,128], index: 2, kind: input, shape index: {}]
  %s3 = inlined_call_operand.vmem [shape: f32[1,128], index: 3, kind: input, shape index: {}]
  %s4 = inlined_call_operand.vmem [shape: f32[128,32], index: 4, kind: input, shape index: {}]
  %s5 = inlined_call_operand.vmem [shape: f32[1,32], index: 5, kind: input, shape index: {}]
  %s6 = inlined_call_operand.vmem [shape: f32[32,128], index: 6, kind: input, shape index: {}]
  %s7 = inlined_call_operand.vmem [shape: f32[1,128], index: 7, kind: input, shape index: {}]
  %s8 = inlined_call_operand.hbm [shape: f32[8,128], index: 8, kind: output, shape index: {}]
  %s9 = sld [smem:[#allocation0]]
  $region42: #{tpu_custom_call.1} parent=0
    _
  %s11 = ssub.s32 1, %s9
  %s12 = scalar_select 0, %s11, %s9
  $region1: #{tpu_custom_call.1} parent=0
    #allocation2 [shape = 'u8[4096]{0}', space=vmem, size = 0x1000, scoped, tag = 'output window, operand 0, single buffered']
    #allocation3 [shape = 's32[1]{0}', space=sflag, size = 0x4, scoped, tag = 'scoped memory for tpu_custom_call.1']
    %13 = vsyncpa [#allocation3], 0
    // Predicated region
    $region2: #{tpu_custom_call.1} parent=1 // pred_check
      _
    $region3: #{tpu_custom_call.1} parent=1 // pred_check_branch
      %15 = sbr.rel (0) target = $region5
    $region4: #{tpu_custom_call.1} parent=1 // pred_region
      _
    $region5: #{tpu_custom_call.1} parent=1 // pred_fallthru
      _
    // Predicated region
    $region6: #{tpu_custom_call.1} parent=1 // pred_check
      _
    $region7: #{tpu_custom_call.1} parent=1 // pred_check_branch
      %17 = sbr.rel (0) target = $region9
    $region8: #{tpu_custom_call.1} parent=1 // pred_region
      _
    $region9: #{tpu_custom_call.1} parent=1 // pred_fallthru
      _
    // Predicated region
    $region10: #{tpu_custom_call.1} parent=1 // pred_check
      _
    $region11: #{tpu_custom_call.1} parent=1 // pred_check_branch
      %19 = sbr.rel (0) target = $region13
    $region12: #{tpu_custom_call.1} parent=1 // pred_region
      _
    $region13: #{tpu_custom_call.1} parent=1 // pred_fallthru
      _
    // Predicated region
    $region14: #{tpu_custom_call.1} parent=1 // pred_check
      _
    $region15: #{tpu_custom_call.1} parent=1 // pred_check_branch
      %21 = sbr.rel (0) target = $region17
    $region16: #{tpu_custom_call.1} parent=1 // pred_region
      _
    $region17: #{tpu_custom_call.1} parent=1 // pred_fallthru
      _
    // Predicated region
    $region18: #{tpu_custom_call.1} parent=1 // pred_check
      _
    $region19: #{tpu_custom_call.1} parent=1 // pred_check_branch
      %23 = sbr.rel (0) target = $region21
    $region20: #{tpu_custom_call.1} parent=1 // pred_region
      _
    $region21: #{tpu_custom_call.1} parent=1 // pred_fallthru
      _
    // Predicated region
    $region22: #{tpu_custom_call.1} parent=1 // pred_check
      _
    $region23: #{tpu_custom_call.1} parent=1 // pred_check_branch
      %25 = sbr.rel (0) target = $region25
    $region24: #{tpu_custom_call.1} parent=1 // pred_region
      _
    $region25: #{tpu_custom_call.1} parent=1 // pred_fallthru
      _
    // Predicated region
    $region26: #{tpu_custom_call.1} parent=1 // pred_check
      _
    $region27: #{tpu_custom_call.1} parent=1 // pred_check_branch
      %27 = sbr.rel (0) target = $region29
    $region28: #{tpu_custom_call.1} parent=1 // pred_region
      _
    $region29: #{tpu_custom_call.1} parent=1 // pred_fallthru
      _
    // Predicated region
    $region30: #{tpu_custom_call.1} parent=1 // pred_check
      _
    $region31: #{tpu_custom_call.1} parent=1 // pred_check_branch
      %29 = sbr.rel (0) target = $region33
    $region32: #{tpu_custom_call.1} parent=1 // pred_region
      _
    $region33: #{tpu_custom_call.1} parent=1 // pred_fallthru
      _
    %v30 = vld [vmem:[%s0] sm:$0xff]
    %v31 = vld [vmem:[%s0 + $0x8] sm:$0xff]
    %v32 = vld [vmem:[%s0 + $0x10] sm:$0xff]
    %v33 = vld [vmem:[%s0 + $0x18] sm:$0xff]
    %v34 = vld [vmem:[%s0 + $0x20] sm:$0xff]
    %v35 = vld [vmem:[%s0 + $0x28] sm:$0xff]
    %v36 = vld [vmem:[%s0 + $0x30] sm:$0xff]
    %v37 = vld [vmem:[%s0 + $0x38] sm:$0xff]
    %v38 = vld [vmem:[%s1] sm:$0xff]
    %v39 = vld [vmem:[%s1 + $0x8] sm:$0xff]
    %v40 = vld [vmem:[%s3] sm:$0x1]
    %v42 = vlaneseq
    %v43 = vshrl.u32 %v42, 7
    %v44 = vsub.s32 0, %v43
    %v45 = vrot.slane %v40, %v44
    %vm47 = vcmask 130048
    %v49 = vsel %vm47, %v30, 0
    %v52 = vsel %vm47, %v31, 0
    %v55 = vsel %vm47, %v32, 0
    %v58 = vsel %vm47, %v33, 0
    %v61 = vsel %vm47, %v34, 0
    %v64 = vsel %vm47, %v35, 0
    %v67 = vsel %vm47, %v36, 0
    %v70 = vsel %vm47, %v37, 0
    %72 = vmatprep.subr.mxu0 0.0
    %73 = vmatpush1.msra.mxu0 0.0
    %74 = vmatprep.subr.mxu0 0.0
    %75 = vmatpush1.msra.mxu0 0.0
    %76 = vmatprep.subr.mxu0 0.0
    %77 = vmatpush1.msra.mxu0 0.0
    %78 = vmatprep.subr.mxu0 0.0
    %79 = vmatpush1.msra.mxu0 0.0
    %80 = vmatprep.subr.mxu0 0.0
    %81 = vmatpush1.msra.mxu0 0.0
    %82 = vmatprep.subr.mxu0 0.0
    %83 = vmatpush1.msra.mxu0 0.0
    %84 = vmatprep.subr.mxu0 0.0
    %85 = vmatpush1.msra.mxu0 0.0
    %86 = vmatprep.subr.mxu0 0.0
    %87 = vmatpush1.msra.mxu0 0.0
    %88 = vmatprep.subr.mxu0 0.0
    %89 = vmatpush1.msra.mxu0 0.0
    %90 = vmatprep.subr.mxu0 0.0
    %91 = vmatpush1.msra.mxu0 0.0
    %92 = vmatprep.subr.mxu0 0.0
    %93 = vmatpush1.msra.mxu0 0.0
    %94 = vmatprep.subr.mxu0 0.0
    %95 = vmatpush1.msra.mxu0 0.0
    %96 = vmatprep.subr.mxu0 0.0
    %97 = vmatpush1.msra.mxu0 0.0
    %98 = vmatprep.subr.mxu0 0.0
    %99 = vmatpush1.msra.mxu0 0.0
    %100 = vmatprep.subr.mxu0 0.0
    %101 = vmatpush1.msra.mxu0 %v39
    %102 = vmatprep.subr.mxu0 0.0
    %103 = vmatpush1.msra.mxu0 %v38
    %104 = vmatprep.subr.mxu0 0.0
    %105 = vmatpush2.msra.mxu0 0.0
    %106 = vmatprep.subr.mxu0 0.0
    %107 = vmatpush2.msra.mxu0 0.0
    %108 = vmatprep.subr.mxu0 0.0
    %109 = vmatpush2.msra.mxu0 0.0
    %110 = vmatprep.subr.mxu0 0.0
    %111 = vmatpush2.msra.mxu0 0.0
    %112 = vmatprep.subr.mxu0 0.0
    %113 = vmatpush2.msra.mxu0 0.0
    %114 = vmatprep.subr.mxu0 0.0
    %115 = vmatpush2.msra.mxu0 0.0
    %116 = vmatprep.subr.mxu0 0.0
    %117 = vmatpush2.msra.mxu0 0.0
    %118 = vmatprep.subr.mxu0 0.0
    %119 = vmatpush2.msra.mxu0 0.0
    %120 = vmatprep.subr.mxu0 0.0
    %121 = vmatpush2.msra.mxu0 0.0
    %122 = vmatprep.subr.mxu0 0.0
    %123 = vmatpush2.msra.mxu0 0.0
    %124 = vmatprep.subr.mxu0 0.0
    %125 = vmatpush2.msra.mxu0 0.0
    %126 = vmatprep.subr.mxu0 0.0
    %127 = vmatpush2.msra.mxu0 0.0
    %128 = vmatprep.subr.mxu0 0.0
    %129 = vmatpush2.msra.mxu0 0.0
    %130 = vmatprep.subr.mxu0 0.0
    %131 = vmatpush2.msra.mxu0 0.0
    %132 = vmatprep.subr.mxu0 0.0
    %133 = vmatpush2.msra.mxu0 0.0
    %134 = vmatprep.subr.mxu0 0.0
    %135 = vmatpush2.msra.mxu0 0.0
    %136 = vmatprep.mubr.f32.mxu0 0.0
    %137 = vmatmul.mubr.f32.gmra.mxu0 %v49
    %v138 = vpop.f32.mrf.mxu0
    %v139 = vadd.f32 %v45, %v138
    %v140 = vpop.f32.mrf.mxu0
    %141 = vmatprep.mubr.f32.mxu0 0.0
    %142 = vmatmul.mubr.f32.gmra.mxu0 %v52
    %v143 = vpop.f32.mrf.mxu0
    %v144 = vadd.f32 %v45, %v143
    %v145 = vpop.f32.mrf.mxu0
    %146 = vmatprep.mubr.f32.mxu0 0.0
    %147 = vmatmul.mubr.f32.gmra.mxu0 %v55
    %v148 = vpop.f32.mrf.mxu0
    %v149 = vadd.f32 %v45, %v148
    %v150 = vpop.f32.mrf.mxu0
    %151 = vmatprep.mubr.f32.mxu0 0.0
    %152 = vmatmul.mubr.f32.gmra.mxu0 %v58
    %v153 = vpop.f32.mrf.mxu0
    %v154 = vadd.f32 %v45, %v153
    %v155 = vpop.f32.mrf.mxu0
    %156 = vmatprep.mubr.f32.mxu0 0.0
    %157 = vmatmul.mubr.f32.gmra.mxu0 %v61
    %v158 = vpop.f32.mrf.mxu0
    %v159 = vadd.f32 %v45, %v158
    %v160 = vpop.f32.mrf.mxu0
    %161 = vmatprep.mubr.f32.mxu0 0.0
    %162 = vmatmul.mubr.f32.gmra.mxu0 %v64
    %v163 = vpop.f32.mrf.mxu0
    %v164 = vadd.f32 %v45, %v163
    %v165 = vpop.f32.mrf.mxu0
    %166 = vmatprep.mubr.f32.mxu0 0.0
    %167 = vmatmul.mubr.f32.gmra.mxu0 %v67
    %v168 = vpop.f32.mrf.mxu0
    %v169 = vadd.f32 %v45, %v168
    %v170 = vpop.f32.mrf.mxu0
    %171 = vmatprep.mubr.f32.mxu0 0.0
    %172 = vmatmul.mubr.f32.gmra.mxu0 %v70
    %v173 = vpop.f32.mrf.mxu0
    %v174 = vadd.f32 %v45, %v173
    %v175 = vpop.f32.mrf.mxu0
    %176 = vdwg.mxu0
    %v177 = vld [vmem:[%s2] sm:$0xff]
    %v178 = vld [vmem:[%s2 + $0x8] sm:$0xff]
    %v179 = vld [vmem:[%s2 + $0x10] sm:$0xff]
    %v180 = vld [vmem:[%s2 + $0x18] sm:$0xff]
    %v181 = vld [vmem:[%s2 + $0x20] sm:$0xff]
    %v182 = vld [vmem:[%s2 + $0x28] sm:$0xff]
    %v183 = vld [vmem:[%s2 + $0x30] sm:$0xff]
    %v184 = vld [vmem:[%s2 + $0x38] sm:$0xff]
    %v185 = vld [vmem:[%s2 + $0x40] sm:$0xff]
    %v186 = vld [vmem:[%s2 + $0x48] sm:$0xff]
    %v187 = vld [vmem:[%s2 + $0x50] sm:$0xff]
    %v188 = vld [vmem:[%s2 + $0x58] sm:$0xff]
    %v189 = vld [vmem:[%s2 + $0x60] sm:$0xff]
    %v190 = vld [vmem:[%s2 + $0x68] sm:$0xff]
    %v191 = vld [vmem:[%s2 + $0x70] sm:$0xff]
    %v192 = vld [vmem:[%s2 + $0x78] sm:$0xff]
    %v193 = vlaneseq
    %v194 = vand.u32 %v193, 127
    %vm195 = vcmp.ge.s32.totalorder %v194, 64
    %vm196 = vcmp.lt.s32.totalorder %v194, 96
    %vm197 = vmand %vm195, %vm196
    %198 = vmatprep.subr.mxu0 0.0
    %199 = vmatpush1.msra.mxu0 %v192
    %200 = vmatprep.subr.mxu0 0.0
    %201 = vmatpush1.msra.mxu0 %v191
    %202 = vmatprep.subr.mxu0 0.0
    %203 = vmatpush1.msra.mxu0 %v190
    %204 = vmatprep.subr.mxu0 0.0
    %205 = vmatpush1.msra.mxu0 %v189
    %206 = vmatprep.subr.mxu0 0.0
    %207 = vmatpush1.msra.mxu0 %v188
    %208 = vmatprep.subr.mxu0 0.0
    %209 = vmatpush1.msra.mxu0 %v187
    %210 = vmatprep.subr.mxu0 0.0
    %211 = vmatpush1.msra.mxu0 %v186
    %212 = vmatprep.subr.mxu0 0.0
    %213 = vmatpush1.msra.mxu0 %v185
    %214 = vmatprep.subr.mxu0 0.0
    %215 = vmatpush1.msra.mxu0 %v184
    %216 = vmatprep.subr.mxu0 0.0
    %217 = vmatpush1.msra.mxu0 %v183
    %218 = vmatprep.subr.mxu0 0.0
    %219 = vmatpush1.msra.mxu0 %v182
    %220 = vmatprep.subr.mxu0 0.0
    %221 = vmatpush1.msra.mxu0 %v181
    %222 = vmatprep.subr.mxu0 0.0
    %223 = vmatpush1.msra.mxu0 %v180
    %224 = vmatprep.subr.mxu0 0.0
    %225 = vmatpush1.msra.mxu0 %v179
    %226 = vmatprep.subr.mxu0 0.0
    %227 = vmatpush1.msra.mxu0 %v178
    %228 = vmatprep.subr.mxu0 0.0
    %229 = vmatpush1.msra.mxu0 %v177
    %230 = vmatprep.subr.mxu0 0.0
    %231 = vmatpush2.msra.mxu0 0.0
    %232 = vmatprep.subr.mxu0 0.0
    %233 = vmatpush2.msra.mxu0 0.0
    %234 = vmatprep.subr.mxu0 0.0
    %235 = vmatpush2.msra.mxu0 0.0
    %236 = vmatprep.subr.mxu0 0.0
    %237 = vmatpush2.msra.mxu0 0.0
    %238 = vmatprep.subr.mxu0 0.0
    %239 = vmatpush2.msra.mxu0 0.0
    %240 = vmatprep.subr.mxu0 0.0
    %241 = vmatpush2.msra.mxu0 0.0
    %242 = vmatprep.subr.mxu0 0.0
    %243 = vmatpush2.msra.mxu0 0.0
    %244 = vmatprep.subr.mxu0 0.0
    %245 = vmatpush2.msra.mxu0 0.0
    %246 = vmatprep.subr.mxu0 0.0
    %247 = vmatpush2.msra.mxu0 0.0
    %248 = vmatprep.subr.mxu0 0.0
    %249 = vmatpush2.msra.mxu0 0.0
    %250 = vmatprep.subr.mxu0 0.0
    %251 = vmatpush2.msra.mxu0 0.0
    %252 = vmatprep.subr.mxu0 0.0
    %253 = vmatpush2.msra.mxu0 0.0
    %254 = vmatprep.subr.mxu0 0.0
    %255 = vmatpush2.msra.mxu0 0.0
    %256 = vmatprep.subr.mxu0 0.0
    %257 = vmatpush2.msra.mxu0 0.0
    %258 = vmatprep.subr.mxu0 0.0
    %259 = vmatpush2.msra.mxu0 0.0
    %260 = vmatprep.subr.mxu0 0.0
    %261 = vmatpush2.msra.mxu0 0.0
    %262 = vmatprep.mubr.f32.mxu0 0.0
    %263 = vmatmul.mubr.f32.gmra.mxu0 0.0
    %v264 = vpop.f32.mrf.mxu0
    %v265 = vadd.f32 0.0, %v264
    %v266 = vpop.f32.mrf.mxu0
    %267 = vdwg.mxu0
    %v268 = vadd.f32 %v139, %v265
    %v269 = vtanh.pop %v268
    %v270 = vmul.f32 %v269, 0.5
    %v271 = vadd.f32 %v270, 0.5
    %v272 = vsel %vm197, %v269, %v271
    %273 = vrot.lane.b32.xlu0 %v272, 32
    %v274 = vpop.permute.xlu0 %273
    %275 = vrot.lane.b32.xlu0 %v272, 64
    %v276 = vpop.permute.xlu0 %275
    %277 = vrot.lane.b32.xlu0 %v272, 96
    %v278 = vpop.permute.xlu0 %277
    %v279 = vmul.f32 %v274, %v278
    %v280 = vmul.f32 %v272, 0.0
    %v281 = vadd.f32 %v280, %v279
    %v282 = vtanh.pop %v281
    %v283 = vmul.f32 %v276, %v282
    %284 = vmatprep.subr.mxu0 0.0
    %285 = vmatpush1.msra.mxu0 %v192
    %286 = vmatprep.subr.mxu0 0.0
    %287 = vmatpush1.msra.mxu0 %v191
    %288 = vmatprep.subr.mxu0 0.0
    %289 = vmatpush1.msra.mxu0 %v190
    %290 = vmatprep.subr.mxu0 0.0
    %291 = vmatpush1.msra.mxu0 %v189
    %292 = vmatprep.subr.mxu0 0.0
    %293 = vmatpush1.msra.mxu0 %v188
    %294 = vmatprep.subr.mxu0 0.0
    %295 = vmatpush1.msra.mxu0 %v187
    %296 = vmatprep.subr.mxu0 0.0
    %297 = vmatpush1.msra.mxu0 %v186
    %298 = vmatprep.subr.mxu0 0.0
    %299 = vmatpush1.msra.mxu0 %v185
    %300 = vmatprep.subr.mxu0 0.0
    %301 = vmatpush1.msra.mxu0 %v184
    %302 = vmatprep.subr.mxu0 0.0
    %303 = vmatpush1.msra.mxu0 %v183
    %304 = vmatprep.subr.mxu0 0.0
    %305 = vmatpush1.msra.mxu0 %v182
    %306 = vmatprep.subr.mxu0 0.0
    %307 = vmatpush1.msra.mxu0 %v181
    %308 = vmatprep.subr.mxu0 0.0
    %309 = vmatpush1.msra.mxu0 %v180
    %310 = vmatprep.subr.mxu0 0.0
    %311 = vmatpush1.msra.mxu0 %v179
    %312 = vmatprep.subr.mxu0 0.0
    %313 = vmatpush1.msra.mxu0 %v178
    %314 = vmatprep.subr.mxu0 0.0
    %315 = vmatpush1.msra.mxu0 %v177
    %316 = vmatprep.subr.mxu0 0.0
    %317 = vmatpush2.msra.mxu0 0.0
    %318 = vmatprep.subr.mxu0 0.0
    %319 = vmatpush2.msra.mxu0 0.0
    %320 = vmatprep.subr.mxu0 0.0
    %321 = vmatpush2.msra.mxu0 0.0
    %322 = vmatprep.subr.mxu0 0.0
    %323 = vmatpush2.msra.mxu0 0.0
    %324 = vmatprep.subr.mxu0 0.0
    %325 = vmatpush2.msra.mxu0 0.0
    %326 = vmatprep.subr.mxu0 0.0
    %327 = vmatpush2.msra.mxu0 0.0
    %328 = vmatprep.subr.mxu0 0.0
    %329 = vmatpush2.msra.mxu0 0.0
    %330 = vmatprep.subr.mxu0 0.0
    %331 = vmatpush2.msra.mxu0 0.0
    %332 = vmatprep.subr.mxu0 0.0
    %333 = vmatpush2.msra.mxu0 0.0
    %334 = vmatprep.subr.mxu0 0.0
    %335 = vmatpush2.msra.mxu0 0.0
    %336 = vmatprep.subr.mxu0 0.0
    %337 = vmatpush2.msra.mxu0 0.0
    %338 = vmatprep.subr.mxu0 0.0
    %339 = vmatpush2.msra.mxu0 0.0
    %340 = vmatprep.subr.mxu0 0.0
    %341 = vmatpush2.msra.mxu0 0.0
    %342 = vmatprep.subr.mxu0 0.0
    %343 = vmatpush2.msra.mxu0 0.0
    %344 = vmatprep.subr.mxu0 0.0
    %345 = vmatpush2.msra.mxu0 0.0
    %346 = vmatprep.subr.mxu0 0.0
    %347 = vmatpush2.msra.mxu0 0.0
    %348 = vmatprep.mubr.f32.mxu0 0.0
    %349 = vmatmul.mubr.f32.gmra.mxu0 %v283
    %v350 = vpop.f32.mrf.mxu0
    %v351 = vadd.f32 0.0, %v350
    %v352 = vpop.f32.mrf.mxu0
    %353 = vdwg.mxu0
    %v354 = vadd.f32 %v144, %v351
    %v355 = vtanh.pop %v354
    %v356 = vmul.f32 %v355, 0.5
    %v357 = vadd.f32 %v356, 0.5
    %v358 = vsel %vm197, %v355, %v357
    %359 = vrot.lane.b32.xlu0 %v358, 32
    %v360 = vpop.permute.xlu0 %359
    %361 = vrot.lane.b32.xlu0 %v358, 64
    %v362 = vpop.permute.xlu0 %361
    %363 = vrot.lane.b32.xlu0 %v358, 96
    %v364 = vpop.permute.xlu0 %363
    %v365 = vmul.f32 %v360, %v364
    %v366 = vmul.f32 %v358, %v281
    %v367 = vadd.f32 %v366, %v365
    %v368 = vtanh.pop %v367
    %v369 = vmul.f32 %v362, %v368
    %370 = vmatprep.subr.mxu0 0.0
    %371 = vmatpush1.msra.mxu0 %v192
    %372 = vmatprep.subr.mxu0 0.0
    %373 = vmatpush1.msra.mxu0 %v191
    %374 = vmatprep.subr.mxu0 0.0
    %375 = vmatpush1.msra.mxu0 %v190
    %376 = vmatprep.subr.mxu0 0.0
    %377 = vmatpush1.msra.mxu0 %v189
    %378 = vmatprep.subr.mxu0 0.0
    %379 = vmatpush1.msra.mxu0 %v188
    %380 = vmatprep.subr.mxu0 0.0
    %381 = vmatpush1.msra.mxu0 %v187
    %382 = vmatprep.subr.mxu0 0.0
    %383 = vmatpush1.msra.mxu0 %v186
    %384 = vmatprep.subr.mxu0 0.0
    %385 = vmatpush1.msra.mxu0 %v185
    %386 = vmatprep.subr.mxu0 0.0
    %387 = vmatpush1.msra.mxu0 %v184
    %388 = vmatprep.subr.mxu0 0.0
    %389 = vmatpush1.msra.mxu0 %v183
    %390 = vmatprep.subr.mxu0 0.0
    %391 = vmatpush1.msra.mxu0 %v182
    %392 = vmatprep.subr.mxu0 0.0
    %393 = vmatpush1.msra.mxu0 %v181
    %394 = vmatprep.subr.mxu0 0.0
    %395 = vmatpush1.msra.mxu0 %v180
    %396 = vmatprep.subr.mxu0 0.0
    %397 = vmatpush1.msra.mxu0 %v179
    %398 = vmatprep.subr.mxu0 0.0
    %399 = vmatpush1.msra.mxu0 %v178
    %400 = vmatprep.subr.mxu0 0.0
    %401 = vmatpush1.msra.mxu0 %v177
    %402 = vmatprep.subr.mxu0 0.0
    %403 = vmatpush2.msra.mxu0 0.0
    %404 = vmatprep.subr.mxu0 0.0
    %405 = vmatpush2.msra.mxu0 0.0
    %406 = vmatprep.subr.mxu0 0.0
    %407 = vmatpush2.msra.mxu0 0.0
    %408 = vmatprep.subr.mxu0 0.0
    %409 = vmatpush2.msra.mxu0 0.0
    %410 = vmatprep.subr.mxu0 0.0
    %411 = vmatpush2.msra.mxu0 0.0
    %412 = vmatprep.subr.mxu0 0.0
    %413 = vmatpush2.msra.mxu0 0.0
    %414 = vmatprep.subr.mxu0 0.0
    %415 = vmatpush2.msra.mxu0 0.0
    %416 = vmatprep.subr.mxu0 0.0
    %417 = vmatpush2.msra.mxu0 0.0
    %418 = vmatprep.subr.mxu0 0.0
    %419 = vmatpush2.msra.mxu0 0.0
    %420 = vmatprep.subr.mxu0 0.0
    %421 = vmatpush2.msra.mxu0 0.0
    %422 = vmatprep.subr.mxu0 0.0
    %423 = vmatpush2.msra.mxu0 0.0
    %424 = vmatprep.subr.mxu0 0.0
    %425 = vmatpush2.msra.mxu0 0.0
    %426 = vmatprep.subr.mxu0 0.0
    %427 = vmatpush2.msra.mxu0 0.0
    %428 = vmatprep.subr.mxu0 0.0
    %429 = vmatpush2.msra.mxu0 0.0
    %430 = vmatprep.subr.mxu0 0.0
    %431 = vmatpush2.msra.mxu0 0.0
    %432 = vmatprep.subr.mxu0 0.0
    %433 = vmatpush2.msra.mxu0 0.0
    %434 = vmatprep.mubr.f32.mxu0 0.0
    %435 = vmatmul.mubr.f32.gmra.mxu0 %v369
    %v436 = vpop.f32.mrf.mxu0
    %v437 = vadd.f32 0.0, %v436
    %v438 = vpop.f32.mrf.mxu0
    %439 = vdwg.mxu0
    %v440 = vadd.f32 %v149, %v437
    %v441 = vtanh.pop %v440
    %v442 = vmul.f32 %v441, 0.5
    %v443 = vadd.f32 %v442, 0.5
    %v444 = vsel %vm197, %v441, %v443
    %445 = vrot.lane.b32.xlu0 %v444, 32
    %v446 = vpop.permute.xlu0 %445
    %447 = vrot.lane.b32.xlu0 %v444, 64
    %v448 = vpop.permute.xlu0 %447
    %449 = vrot.lane.b32.xlu0 %v444, 96
    %v450 = vpop.permute.xlu0 %449
    %v451 = vmul.f32 %v446, %v450
    %v452 = vmul.f32 %v444, %v367
    %v453 = vadd.f32 %v452, %v451
    %v454 = vtanh.pop %v453
    %v455 = vmul.f32 %v448, %v454
    %456 = vmatprep.subr.mxu0 0.0
    %457 = vmatpush1.msra.mxu0 %v192
    %458 = vmatprep.subr.mxu0 0.0
    %459 = vmatpush1.msra.mxu0 %v191
    %460 = vmatprep.subr.mxu0 0.0
    %461 = vmatpush1.msra.mxu0 %v190
    %462 = vmatprep.subr.mxu0 0.0
    %463 = vmatpush1.msra.mxu0 %v189
    %464 = vmatprep.subr.mxu0 0.0
    %465 = vmatpush1.msra.mxu0 %v188
    %466 = vmatprep.subr.mxu0 0.0
    %467 = vmatpush1.msra.mxu0 %v187
    %468 = vmatprep.subr.mxu0 0.0
    %469 = vmatpush1.msra.mxu0 %v186
    %470 = vmatprep.subr.mxu0 0.0
    %471 = vmatpush1.msra.mxu0 %v185
    %472 = vmatprep.subr.mxu0 0.0
    %473 = vmatpush1.msra.mxu0 %v184
    %474 = vmatprep.subr.mxu0 0.0
    %475 = vmatpush1.msra.mxu0 %v183
    %476 = vmatprep.subr.mxu0 0.0
    %477 = vmatpush1.msra.mxu0 %v182
    %478 = vmatprep.subr.mxu0 0.0
    %479 = vmatpush1.msra.mxu0 %v181
    %480 = vmatprep.subr.mxu0 0.0
    %481 = vmatpush1.msra.mxu0 %v180
    %482 = vmatprep.subr.mxu0 0.0
    %483 = vmatpush1.msra.mxu0 %v179
    %484 = vmatprep.subr.mxu0 0.0
    %485 = vmatpush1.msra.mxu0 %v178
    %486 = vmatprep.subr.mxu0 0.0
    %487 = vmatpush1.msra.mxu0 %v177
    %488 = vmatprep.subr.mxu0 0.0
    %489 = vmatpush2.msra.mxu0 0.0
    %490 = vmatprep.subr.mxu0 0.0
    %491 = vmatpush2.msra.mxu0 0.0
    %492 = vmatprep.subr.mxu0 0.0
    %493 = vmatpush2.msra.mxu0 0.0
    %494 = vmatprep.subr.mxu0 0.0
    %495 = vmatpush2.msra.mxu0 0.0
    %496 = vmatprep.subr.mxu0 0.0
    %497 = vmatpush2.msra.mxu0 0.0
    %498 = vmatprep.subr.mxu0 0.0
    %499 = vmatpush2.msra.mxu0 0.0
    %500 = vmatprep.subr.mxu0 0.0
    %501 = vmatpush2.msra.mxu0 0.0
    %502 = vmatprep.subr.mxu0 0.0
    %503 = vmatpush2.msra.mxu0 0.0
    %504 = vmatprep.subr.mxu0 0.0
    %505 = vmatpush2.msra.mxu0 0.0
    %506 = vmatprep.subr.mxu0 0.0
    %507 = vmatpush2.msra.mxu0 0.0
    %508 = vmatprep.subr.mxu0 0.0
    %509 = vmatpush2.msra.mxu0 0.0
    %510 = vmatprep.subr.mxu0 0.0
    %511 = vmatpush2.msra.mxu0 0.0
    %512 = vmatprep.subr.mxu0 0.0
    %513 = vmatpush2.msra.mxu0 0.0
    %514 = vmatprep.subr.mxu0 0.0
    %515 = vmatpush2.msra.mxu0 0.0
    %516 = vmatprep.subr.mxu0 0.0
    %517 = vmatpush2.msra.mxu0 0.0
    %518 = vmatprep.subr.mxu0 0.0
    %519 = vmatpush2.msra.mxu0 0.0
    %520 = vmatprep.mubr.f32.mxu0 0.0
    %521 = vmatmul.mubr.f32.gmra.mxu0 %v455
    %v522 = vpop.f32.mrf.mxu0
    %v523 = vadd.f32 0.0, %v522
    %v524 = vpop.f32.mrf.mxu0
    %525 = vdwg.mxu0
    %v526 = vadd.f32 %v154, %v523
    %v527 = vtanh.pop %v526
    %v528 = vmul.f32 %v527, 0.5
    %v529 = vadd.f32 %v528, 0.5
    %v530 = vsel %vm197, %v527, %v529
    %531 = vrot.lane.b32.xlu0 %v530, 32
    %v532 = vpop.permute.xlu0 %531
    %533 = vrot.lane.b32.xlu0 %v530, 64
    %v534 = vpop.permute.xlu0 %533
    %535 = vrot.lane.b32.xlu0 %v530, 96
    %v536 = vpop.permute.xlu0 %535
    %v537 = vmul.f32 %v532, %v536
    %v538 = vmul.f32 %v530, %v453
    %v539 = vadd.f32 %v538, %v537
    %v540 = vtanh.pop %v539
    %v541 = vmul.f32 %v534, %v540
    %542 = vmatprep.subr.mxu0 0.0
    %543 = vmatpush1.msra.mxu0 %v192
    %544 = vmatprep.subr.mxu0 0.0
    %545 = vmatpush1.msra.mxu0 %v191
    %546 = vmatprep.subr.mxu0 0.0
    %547 = vmatpush1.msra.mxu0 %v190
    %548 = vmatprep.subr.mxu0 0.0
    %549 = vmatpush1.msra.mxu0 %v189
    %550 = vmatprep.subr.mxu0 0.0
    %551 = vmatpush1.msra.mxu0 %v188
    %552 = vmatprep.subr.mxu0 0.0
    %553 = vmatpush1.msra.mxu0 %v187
    %554 = vmatprep.subr.mxu0 0.0
    %555 = vmatpush1.msra.mxu0 %v186
    %556 = vmatprep.subr.mxu0 0.0
    %557 = vmatpush1.msra.mxu0 %v185
    %558 = vmatprep.subr.mxu0 0.0
    %559 = vmatpush1.msra.mxu0 %v184
    %560 = vmatprep.subr.mxu0 0.0
    %561 = vmatpush1.msra.mxu0 %v183
    %562 = vmatprep.subr.mxu0 0.0
    %563 = vmatpush1.msra.mxu0 %v182
    %564 = vmatprep.subr.mxu0 0.0
    %565 = vmatpush1.msra.mxu0 %v181
    %566 = vmatprep.subr.mxu0 0.0
    %567 = vmatpush1.msra.mxu0 %v180
    %568 = vmatprep.subr.mxu0 0.0
    %569 = vmatpush1.msra.mxu0 %v179
    %570 = vmatprep.subr.mxu0 0.0
    %571 = vmatpush1.msra.mxu0 %v178
    %572 = vmatprep.subr.mxu0 0.0
    %573 = vmatpush1.msra.mxu0 %v177
    %574 = vmatprep.subr.mxu0 0.0
    %575 = vmatpush2.msra.mxu0 0.0
    %576 = vmatprep.subr.mxu0 0.0
    %577 = vmatpush2.msra.mxu0 0.0
    %578 = vmatprep.subr.mxu0 0.0
    %579 = vmatpush2.msra.mxu0 0.0
    %580 = vmatprep.subr.mxu0 0.0
    %581 = vmatpush2.msra.mxu0 0.0
    %582 = vmatprep.subr.mxu0 0.0
    %583 = vmatpush2.msra.mxu0 0.0
    %584 = vmatprep.subr.mxu0 0.0
    %585 = vmatpush2.msra.mxu0 0.0
    %586 = vmatprep.subr.mxu0 0.0
    %587 = vmatpush2.msra.mxu0 0.0
    %588 = vmatprep.subr.mxu0 0.0
    %589 = vmatpush2.msra.mxu0 0.0
    %590 = vmatprep.subr.mxu0 0.0
    %591 = vmatpush2.msra.mxu0 0.0
    %592 = vmatprep.subr.mxu0 0.0
    %593 = vmatpush2.msra.mxu0 0.0
    %594 = vmatprep.subr.mxu0 0.0
    %595 = vmatpush2.msra.mxu0 0.0
    %596 = vmatprep.subr.mxu0 0.0
    %597 = vmatpush2.msra.mxu0 0.0
    %598 = vmatprep.subr.mxu0 0.0
    %599 = vmatpush2.msra.mxu0 0.0
    %600 = vmatprep.subr.mxu0 0.0
    %601 = vmatpush2.msra.mxu0 0.0
    %602 = vmatprep.subr.mxu0 0.0
    %603 = vmatpush2.msra.mxu0 0.0
    %604 = vmatprep.subr.mxu0 0.0
    %605 = vmatpush2.msra.mxu0 0.0
    %606 = vmatprep.mubr.f32.mxu0 0.0
    %607 = vmatmul.mubr.f32.gmra.mxu0 %v541
    %v608 = vpop.f32.mrf.mxu0
    %v609 = vadd.f32 0.0, %v608
    %v610 = vpop.f32.mrf.mxu0
    %611 = vdwg.mxu0
    %v612 = vadd.f32 %v159, %v609
    %v613 = vtanh.pop %v612
    %v614 = vmul.f32 %v613, 0.5
    %v615 = vadd.f32 %v614, 0.5
    %v616 = vsel %vm197, %v613, %v615
    %617 = vrot.lane.b32.xlu0 %v616, 32
    %v618 = vpop.permute.xlu0 %617
    %619 = vrot.lane.b32.xlu0 %v616, 64
    %v620 = vpop.permute.xlu0 %619
    %621 = vrot.lane.b32.xlu0 %v616, 96
    %v622 = vpop.permute.xlu0 %621
    %v623 = vmul.f32 %v618, %v622
    %v624 = vmul.f32 %v616, %v539
    %v625 = vadd.f32 %v624, %v623
    %v626 = vtanh.pop %v625
    %v627 = vmul.f32 %v620, %v626
    %628 = vmatprep.subr.mxu0 0.0
    %629 = vmatpush1.msra.mxu0 %v192
    %630 = vmatprep.subr.mxu0 0.0
    %631 = vmatpush1.msra.mxu0 %v191
    %632 = vmatprep.subr.mxu0 0.0
    %633 = vmatpush1.msra.mxu0 %v190
    %634 = vmatprep.subr.mxu0 0.0
    %635 = vmatpush1.msra.mxu0 %v189
    %636 = vmatprep.subr.mxu0 0.0
    %637 = vmatpush1.msra.mxu0 %v188
    %638 = vmatprep.subr.mxu0 0.0
    %639 = vmatpush1.msra.mxu0 %v187
    %640 = vmatprep.subr.mxu0 0.0
    %641 = vmatpush1.msra.mxu0 %v186
    %642 = vmatprep.subr.mxu0 0.0
    %643 = vmatpush1.msra.mxu0 %v185
    %644 = vmatprep.subr.mxu0 0.0
    %645 = vmatpush1.msra.mxu0 %v184
    %646 = vmatprep.subr.mxu0 0.0
    %647 = vmatpush1.msra.mxu0 %v183
    %648 = vmatprep.subr.mxu0 0.0
    %649 = vmatpush1.msra.mxu0 %v182
    %650 = vmatprep.subr.mxu0 0.0
    %651 = vmatpush1.msra.mxu0 %v181
    %652 = vmatprep.subr.mxu0 0.0
    %653 = vmatpush1.msra.mxu0 %v180
    %654 = vmatprep.subr.mxu0 0.0
    %655 = vmatpush1.msra.mxu0 %v179
    %656 = vmatprep.subr.mxu0 0.0
    %657 = vmatpush1.msra.mxu0 %v178
    %658 = vmatprep.subr.mxu0 0.0
    %659 = vmatpush1.msra.mxu0 %v177
    %660 = vmatprep.subr.mxu0 0.0
    %661 = vmatpush2.msra.mxu0 0.0
    %662 = vmatprep.subr.mxu0 0.0
    %663 = vmatpush2.msra.mxu0 0.0
    %664 = vmatprep.subr.mxu0 0.0
    %665 = vmatpush2.msra.mxu0 0.0
    %666 = vmatprep.subr.mxu0 0.0
    %667 = vmatpush2.msra.mxu0 0.0
    %668 = vmatprep.subr.mxu0 0.0
    %669 = vmatpush2.msra.mxu0 0.0
    %670 = vmatprep.subr.mxu0 0.0
    %671 = vmatpush2.msra.mxu0 0.0
    %672 = vmatprep.subr.mxu0 0.0
    %673 = vmatpush2.msra.mxu0 0.0
    %674 = vmatprep.subr.mxu0 0.0
    %675 = vmatpush2.msra.mxu0 0.0
    %676 = vmatprep.subr.mxu0 0.0
    %677 = vmatpush2.msra.mxu0 0.0
    %678 = vmatprep.subr.mxu0 0.0
    %679 = vmatpush2.msra.mxu0 0.0
    %680 = vmatprep.subr.mxu0 0.0
    %681 = vmatpush2.msra.mxu0 0.0
    %682 = vmatprep.subr.mxu0 0.0
    %683 = vmatpush2.msra.mxu0 0.0
    %684 = vmatprep.subr.mxu0 0.0
    %685 = vmatpush2.msra.mxu0 0.0
    %686 = vmatprep.subr.mxu0 0.0
    %687 = vmatpush2.msra.mxu0 0.0
    %688 = vmatprep.subr.mxu0 0.0
    %689 = vmatpush2.msra.mxu0 0.0
    %690 = vmatprep.subr.mxu0 0.0
    %691 = vmatpush2.msra.mxu0 0.0
    %692 = vmatprep.mubr.f32.mxu0 0.0
    %693 = vmatmul.mubr.f32.gmra.mxu0 %v627
    %v694 = vpop.f32.mrf.mxu0
    %v695 = vadd.f32 0.0, %v694
    %v696 = vpop.f32.mrf.mxu0
    %697 = vdwg.mxu0
    %v698 = vadd.f32 %v164, %v695
    %v699 = vtanh.pop %v698
    %v700 = vmul.f32 %v699, 0.5
    %v701 = vadd.f32 %v700, 0.5
    %v702 = vsel %vm197, %v699, %v701
    %703 = vrot.lane.b32.xlu0 %v702, 32
    %v704 = vpop.permute.xlu0 %703
    %705 = vrot.lane.b32.xlu0 %v702, 64
    %v706 = vpop.permute.xlu0 %705
    %707 = vrot.lane.b32.xlu0 %v702, 96
    %v708 = vpop.permute.xlu0 %707
    %v709 = vmul.f32 %v704, %v708
    %v710 = vmul.f32 %v702, %v625
    %v711 = vadd.f32 %v710, %v709
    %v712 = vtanh.pop %v711
    %v713 = vmul.f32 %v706, %v712
    %714 = vmatprep.subr.mxu0 0.0
    %715 = vmatpush1.msra.mxu0 %v192
    %716 = vmatprep.subr.mxu0 0.0
    %717 = vmatpush1.msra.mxu0 %v191
    %718 = vmatprep.subr.mxu0 0.0
    %719 = vmatpush1.msra.mxu0 %v190
    %720 = vmatprep.subr.mxu0 0.0
    %721 = vmatpush1.msra.mxu0 %v189
    %722 = vmatprep.subr.mxu0 0.0
    %723 = vmatpush1.msra.mxu0 %v188
    %724 = vmatprep.subr.mxu0 0.0
    %725 = vmatpush1.msra.mxu0 %v187
    %726 = vmatprep.subr.mxu0 0.0
    %727 = vmatpush1.msra.mxu0 %v186
    %728 = vmatprep.subr.mxu0 0.0
    %729 = vmatpush1.msra.mxu0 %v185
    %730 = vmatprep.subr.mxu0 0.0
    %731 = vmatpush1.msra.mxu0 %v184
    %732 = vmatprep.subr.mxu0 0.0
    %733 = vmatpush1.msra.mxu0 %v183
    %734 = vmatprep.subr.mxu0 0.0
    %735 = vmatpush1.msra.mxu0 %v182
    %736 = vmatprep.subr.mxu0 0.0
    %737 = vmatpush1.msra.mxu0 %v181
    %738 = vmatprep.subr.mxu0 0.0
    %739 = vmatpush1.msra.mxu0 %v180
    %740 = vmatprep.subr.mxu0 0.0
    %741 = vmatpush1.msra.mxu0 %v179
    %742 = vmatprep.subr.mxu0 0.0
    %743 = vmatpush1.msra.mxu0 %v178
    %744 = vmatprep.subr.mxu0 0.0
    %745 = vmatpush1.msra.mxu0 %v177
    %746 = vmatprep.subr.mxu0 0.0
    %747 = vmatpush2.msra.mxu0 0.0
    %748 = vmatprep.subr.mxu0 0.0
    %749 = vmatpush2.msra.mxu0 0.0
    %750 = vmatprep.subr.mxu0 0.0
    %751 = vmatpush2.msra.mxu0 0.0
    %752 = vmatprep.subr.mxu0 0.0
    %753 = vmatpush2.msra.mxu0 0.0
    %754 = vmatprep.subr.mxu0 0.0
    %755 = vmatpush2.msra.mxu0 0.0
    %756 = vmatprep.subr.mxu0 0.0
    %757 = vmatpush2.msra.mxu0 0.0
    %758 = vmatprep.subr.mxu0 0.0
    %759 = vmatpush2.msra.mxu0 0.0
    %760 = vmatprep.subr.mxu0 0.0
    %761 = vmatpush2.msra.mxu0 0.0
    %762 = vmatprep.subr.mxu0 0.0
    %763 = vmatpush2.msra.mxu0 0.0
    %764 = vmatprep.subr.mxu0 0.0
    %765 = vmatpush2.msra.mxu0 0.0
    %766 = vmatprep.subr.mxu0 0.0
    %767 = vmatpush2.msra.mxu0 0.0
    %768 = vmatprep.subr.mxu0 0.0
    %769 = vmatpush2.msra.mxu0 0.0
    %770 = vmatprep.subr.mxu0 0.0
    %771 = vmatpush2.msra.mxu0 0.0
    %772 = vmatprep.subr.mxu0 0.0
    %773 = vmatpush2.msra.mxu0 0.0
    %774 = vmatprep.subr.mxu0 0.0
    %775 = vmatpush2.msra.mxu0 0.0
    %776 = vmatprep.subr.mxu0 0.0
    %777 = vmatpush2.msra.mxu0 0.0
    %778 = vmatprep.mubr.f32.mxu0 0.0
    %779 = vmatmul.mubr.f32.gmra.mxu0 %v713
    %v780 = vpop.f32.mrf.mxu0
    %v781 = vadd.f32 0.0, %v780
    %v782 = vpop.f32.mrf.mxu0
    %783 = vdwg.mxu0
    %v784 = vadd.f32 %v169, %v781
    %v785 = vtanh.pop %v784
    %v786 = vmul.f32 %v785, 0.5
    %v787 = vadd.f32 %v786, 0.5
    %v788 = vsel %vm197, %v785, %v787
    %789 = vrot.lane.b32.xlu0 %v788, 32
    %v790 = vpop.permute.xlu0 %789
    %791 = vrot.lane.b32.xlu0 %v788, 64
    %v792 = vpop.permute.xlu0 %791
    %793 = vrot.lane.b32.xlu0 %v788, 96
    %v794 = vpop.permute.xlu0 %793
    %v795 = vmul.f32 %v790, %v794
    %v796 = vmul.f32 %v788, %v711
    %v797 = vadd.f32 %v796, %v795
    %v798 = vtanh.pop %v797
    %v799 = vmul.f32 %v792, %v798
    %800 = vmatprep.subr.mxu0 0.0
    %801 = vmatpush1.msra.mxu0 %v192
    %802 = vmatprep.subr.mxu0 0.0
    %803 = vmatpush1.msra.mxu0 %v191
    %804 = vmatprep.subr.mxu0 0.0
    %805 = vmatpush1.msra.mxu0 %v190
    %806 = vmatprep.subr.mxu0 0.0
    %807 = vmatpush1.msra.mxu0 %v189
    %808 = vmatprep.subr.mxu0 0.0
    %809 = vmatpush1.msra.mxu0 %v188
    %810 = vmatprep.subr.mxu0 0.0
    %811 = vmatpush1.msra.mxu0 %v187
    %812 = vmatprep.subr.mxu0 0.0
    %813 = vmatpush1.msra.mxu0 %v186
    %814 = vmatprep.subr.mxu0 0.0
    %815 = vmatpush1.msra.mxu0 %v185
    %816 = vmatprep.subr.mxu0 0.0
    %817 = vmatpush1.msra.mxu0 %v184
    %818 = vmatprep.subr.mxu0 0.0
    %819 = vmatpush1.msra.mxu0 %v183
    %820 = vmatprep.subr.mxu0 0.0
    %821 = vmatpush1.msra.mxu0 %v182
    %822 = vmatprep.subr.mxu0 0.0
    %823 = vmatpush1.msra.mxu0 %v181
    %824 = vmatprep.subr.mxu0 0.0
    %825 = vmatpush1.msra.mxu0 %v180
    %826 = vmatprep.subr.mxu0 0.0
    %827 = vmatpush1.msra.mxu0 %v179
    %828 = vmatprep.subr.mxu0 0.0
    %829 = vmatpush1.msra.mxu0 %v178
    %830 = vmatprep.subr.mxu0 0.0
    %831 = vmatpush1.msra.mxu0 %v177
    %832 = vmatprep.subr.mxu0 0.0
    %833 = vmatpush2.msra.mxu0 0.0
    %834 = vmatprep.subr.mxu0 0.0
    %835 = vmatpush2.msra.mxu0 0.0
    %836 = vmatprep.subr.mxu0 0.0
    %837 = vmatpush2.msra.mxu0 0.0
    %838 = vmatprep.subr.mxu0 0.0
    %839 = vmatpush2.msra.mxu0 0.0
    %840 = vmatprep.subr.mxu0 0.0
    %841 = vmatpush2.msra.mxu0 0.0
    %842 = vmatprep.subr.mxu0 0.0
    %843 = vmatpush2.msra.mxu0 0.0
    %844 = vmatprep.subr.mxu0 0.0
    %845 = vmatpush2.msra.mxu0 0.0
    %846 = vmatprep.subr.mxu0 0.0
    %847 = vmatpush2.msra.mxu0 0.0
    %848 = vmatprep.subr.mxu0 0.0
    %849 = vmatpush2.msra.mxu0 0.0
    %850 = vmatprep.subr.mxu0 0.0
    %851 = vmatpush2.msra.mxu0 0.0
    %852 = vmatprep.subr.mxu0 0.0
    %853 = vmatpush2.msra.mxu0 0.0
    %854 = vmatprep.subr.mxu0 0.0
    %855 = vmatpush2.msra.mxu0 0.0
    %856 = vmatprep.subr.mxu0 0.0
    %857 = vmatpush2.msra.mxu0 0.0
    %858 = vmatprep.subr.mxu0 0.0
    %859 = vmatpush2.msra.mxu0 0.0
    %860 = vmatprep.subr.mxu0 0.0
    %861 = vmatpush2.msra.mxu0 0.0
    %862 = vmatprep.subr.mxu0 0.0
    %863 = vmatpush2.msra.mxu0 0.0
    %864 = vmatprep.mubr.f32.mxu0 0.0
    %865 = vmatmul.mubr.f32.gmra.mxu0 %v799
    %v866 = vpop.f32.mrf.mxu0
    %v867 = vadd.f32 0.0, %v866
    %v868 = vpop.f32.mrf.mxu0
    %869 = vdwg.mxu0
    %v870 = vadd.f32 %v174, %v867
    %v871 = vtanh.pop %v870
    %v872 = vmul.f32 %v871, 0.5
    %v873 = vadd.f32 %v872, 0.5
    %v874 = vsel %vm197, %v871, %v873
    %875 = vrot.lane.b32.xlu0 %v874, 32
    %v876 = vpop.permute.xlu0 %875
    %877 = vrot.lane.b32.xlu0 %v874, 64
    %v878 = vpop.permute.xlu0 %877
    %879 = vrot.lane.b32.xlu0 %v874, 96
    %v880 = vpop.permute.xlu0 %879
    %v881 = vmul.f32 %v876, %v880
    %v882 = vmul.f32 %v874, %v797
    %v883 = vadd.f32 %v882, %v881
    %v884 = vtanh.pop %v883
    %v885 = vmul.f32 %v878, %v884
    %v886 = vld [vmem:[%s4] sm:$0xff]
    %v887 = vld [vmem:[%s4 + $0x8] sm:$0xff]
    %v888 = vld [vmem:[%s4 + $0x10] sm:$0xff]
    %v889 = vld [vmem:[%s4 + $0x18] sm:$0xff]
    %v890 = vld [vmem:[%s4 + $0x20] sm:$0xff]
    %v891 = vld [vmem:[%s4 + $0x28] sm:$0xff]
    %v892 = vld [vmem:[%s4 + $0x30] sm:$0xff]
    %v893 = vld [vmem:[%s4 + $0x38] sm:$0xff]
    %v894 = vld [vmem:[%s4 + $0x40] sm:$0xff]
    %v895 = vld [vmem:[%s4 + $0x48] sm:$0xff]
    %v896 = vld [vmem:[%s4 + $0x50] sm:$0xff]
    %v897 = vld [vmem:[%s4 + $0x58] sm:$0xff]
    %v898 = vld [vmem:[%s4 + $0x60] sm:$0xff]
    %v899 = vld [vmem:[%s4 + $0x68] sm:$0xff]
    %v900 = vld [vmem:[%s4 + $0x70] sm:$0xff]
    %v901 = vld [vmem:[%s4 + $0x78] sm:$0xff]
    %v902 = vld [vmem:[%s5] sm:$0x1]
    %v904 = vlaneseq
    %v905 = vshrl.u32 %v904, 7
    %v906 = vsub.s32 0, %v905
    %v907 = vrot.slane %v902, %v906
    %909 = vmatprep.subr.mxu0 0.0
    %910 = vmatpush1.msra.mxu0 %v901
    %911 = vmatprep.subr.mxu0 0.0
    %912 = vmatpush1.msra.mxu0 %v900
    %913 = vmatprep.subr.mxu0 0.0
    %914 = vmatpush1.msra.mxu0 %v899
    %915 = vmatprep.subr.mxu0 0.0
    %916 = vmatpush1.msra.mxu0 %v898
    %917 = vmatprep.subr.mxu0 0.0
    %918 = vmatpush1.msra.mxu0 %v897
    %919 = vmatprep.subr.mxu0 0.0
    %920 = vmatpush1.msra.mxu0 %v896
    %921 = vmatprep.subr.mxu0 0.0
    %922 = vmatpush1.msra.mxu0 %v895
    %923 = vmatprep.subr.mxu0 0.0
    %924 = vmatpush1.msra.mxu0 %v894
    %925 = vmatprep.subr.mxu0 0.0
    %926 = vmatpush1.msra.mxu0 %v893
    %927 = vmatprep.subr.mxu0 0.0
    %928 = vmatpush1.msra.mxu0 %v892
    %929 = vmatprep.subr.mxu0 0.0
    %930 = vmatpush1.msra.mxu0 %v891
    %931 = vmatprep.subr.mxu0 0.0
    %932 = vmatpush1.msra.mxu0 %v890
    %933 = vmatprep.subr.mxu0 0.0
    %934 = vmatpush1.msra.mxu0 %v889
    %935 = vmatprep.subr.mxu0 0.0
    %936 = vmatpush1.msra.mxu0 %v888
    %937 = vmatprep.subr.mxu0 0.0
    %938 = vmatpush1.msra.mxu0 %v887
    %939 = vmatprep.subr.mxu0 0.0
    %940 = vmatpush1.msra.mxu0 %v886
    %941 = vmatprep.subr.mxu0 0.0
    %942 = vmatpush2.msra.mxu0 0.0
    %943 = vmatprep.subr.mxu0 0.0
    %944 = vmatpush2.msra.mxu0 0.0
    %945 = vmatprep.subr.mxu0 0.0
    %946 = vmatpush2.msra.mxu0 0.0
    %947 = vmatprep.subr.mxu0 0.0
    %948 = vmatpush2.msra.mxu0 0.0
    %949 = vmatprep.subr.mxu0 0.0
    %950 = vmatpush2.msra.mxu0 0.0
    %951 = vmatprep.subr.mxu0 0.0
    %952 = vmatpush2.msra.mxu0 0.0
    %953 = vmatprep.subr.mxu0 0.0
    %954 = vmatpush2.msra.mxu0 0.0
    %955 = vmatprep.subr.mxu0 0.0
    %956 = vmatpush2.msra.mxu0 0.0
    %957 = vmatprep.subr.mxu0 0.0
    %958 = vmatpush2.msra.mxu0 0.0
    %959 = vmatprep.subr.mxu0 0.0
    %960 = vmatpush2.msra.mxu0 0.0
    %961 = vmatprep.subr.mxu0 0.0
    %962 = vmatpush2.msra.mxu0 0.0
    %963 = vmatprep.subr.mxu0 0.0
    %964 = vmatpush2.msra.mxu0 0.0
    %965 = vmatprep.subr.mxu0 0.0
    %966 = vmatpush2.msra.mxu0 0.0
    %967 = vmatprep.subr.mxu0 0.0
    %968 = vmatpush2.msra.mxu0 0.0
    %969 = vmatprep.subr.mxu0 0.0
    %970 = vmatpush2.msra.mxu0 0.0
    %971 = vmatprep.subr.mxu0 0.0
    %972 = vmatpush2.msra.mxu0 0.0
    %973 = vmatprep.mubr.f32.mxu0 0.0
    %974 = vmatmul.mubr.f32.gmra.mxu0 %v885
    %v975 = vpop.f32.mrf.mxu0
    %v976 = vadd.f32 %v907, %v975
    %v977 = vpop.f32.mrf.mxu0
    %978 = vdwg.mxu0
    %v979 = vmax.f32 %v976, 0.0
    %v980 = vld [vmem:[%s6] sm:$0xff]
    %v981 = vld [vmem:[%s6 + $0x8] sm:$0xff]
    %v982 = vld [vmem:[%s6 + $0x10] sm:$0xff]
    %v983 = vld [vmem:[%s6 + $0x18] sm:$0xff]
    %v984 = vld [vmem:[%s7] sm:$0x1]
    %v986 = vlaneseq
    %v987 = vshrl.u32 %v986, 7
    %v988 = vsub.s32 0, %v987
    %v989 = vrot.slane %v984, %v988
    %vm991 = vcmask 261120
    %v993 = vsel %vm991, %v979, 0
    %995 = vmatprep.subr.mxu0 0.0
    %996 = vmatpush1.msra.mxu0 0.0
    %997 = vmatprep.subr.mxu0 0.0
    %998 = vmatpush1.msra.mxu0 0.0
    %999 = vmatprep.subr.mxu0 0.0
    %1000 = vmatpush1.msra.mxu0 0.0
    %1001 = vmatprep.subr.mxu0 0.0
    %1002 = vmatpush1.msra.mxu0 0.0
    %1003 = vmatprep.subr.mxu0 0.0
    %1004 = vmatpush1.msra.mxu0 0.0
    %1005 = vmatprep.subr.mxu0 0.0
    %1006 = vmatpush1.msra.mxu0 0.0
    %1007 = vmatprep.subr.mxu0 0.0
    %1008 = vmatpush1.msra.mxu0 0.0
    %1009 = vmatprep.subr.mxu0 0.0
    %1010 = vmatpush1.msra.mxu0 0.0
    %1011 = vmatprep.subr.mxu0 0.0
    %1012 = vmatpush1.msra.mxu0 0.0
    %1013 = vmatprep.subr.mxu0 0.0
    %1014 = vmatpush1.msra.mxu0 0.0
    %1015 = vmatprep.subr.mxu0 0.0
    %1016 = vmatpush1.msra.mxu0 0.0
    %1017 = vmatprep.subr.mxu0 0.0
    %1018 = vmatpush1.msra.mxu0 0.0
    %1019 = vmatprep.subr.mxu0 0.0
    %1020 = vmatpush1.msra.mxu0 %v983
    %1021 = vmatprep.subr.mxu0 0.0
    %1022 = vmatpush1.msra.mxu0 %v982
    %1023 = vmatprep.subr.mxu0 0.0
    %1024 = vmatpush1.msra.mxu0 %v981
    %1025 = vmatprep.subr.mxu0 0.0
    %1026 = vmatpush1.msra.mxu0 %v980
    %1027 = vmatprep.subr.mxu0 0.0
    %1028 = vmatpush2.msra.mxu0 0.0
    %1029 = vmatprep.subr.mxu0 0.0
    %1030 = vmatpush2.msra.mxu0 0.0
    %1031 = vmatprep.subr.mxu0 0.0
    %1032 = vmatpush2.msra.mxu0 0.0
    %1033 = vmatprep.subr.mxu0 0.0
    %1034 = vmatpush2.msra.mxu0 0.0
    %1035 = vmatprep.subr.mxu0 0.0
    %1036 = vmatpush2.msra.mxu0 0.0
    %1037 = vmatprep.subr.mxu0 0.0
    %1038 = vmatpush2.msra.mxu0 0.0
    %1039 = vmatprep.subr.mxu0 0.0
    %1040 = vmatpush2.msra.mxu0 0.0
    %1041 = vmatprep.subr.mxu0 0.0
    %1042 = vmatpush2.msra.mxu0 0.0
    %1043 = vmatprep.subr.mxu0 0.0
    %1044 = vmatpush2.msra.mxu0 0.0
    %1045 = vmatprep.subr.mxu0 0.0
    %1046 = vmatpush2.msra.mxu0 0.0
    %1047 = vmatprep.subr.mxu0 0.0
    %1048 = vmatpush2.msra.mxu0 0.0
    %1049 = vmatprep.subr.mxu0 0.0
    %1050 = vmatpush2.msra.mxu0 0.0
    %1051 = vmatprep.subr.mxu0 0.0
    %1052 = vmatpush2.msra.mxu0 0.0
    %1053 = vmatprep.subr.mxu0 0.0
    %1054 = vmatpush2.msra.mxu0 0.0
    %1055 = vmatprep.subr.mxu0 0.0
    %1056 = vmatpush2.msra.mxu0 0.0
    %1057 = vmatprep.subr.mxu0 0.0
    %1058 = vmatpush2.msra.mxu0 0.0
    %1059 = vmatprep.mubr.f32.mxu0 0.0
    %1060 = vmatmul.mubr.f32.gmra.mxu0 %v993
    %v1061 = vpop.f32.mrf.mxu0
    %v1062 = vadd.f32 %v989, %v1061
    %v1063 = vpop.f32.mrf.mxu0
    %1064 = vdwg.mxu0
    %1065 = vst [vmem:[#allocation2] sm:$0xff] %v1062
    // Predicated region
    $region34: #{tpu_custom_call.1} parent=1 // pred_check
      _
    $region35: #{tpu_custom_call.1} parent=1 // pred_check_branch
      %1067 = sbr.rel (0) target = $region37
    $region36: #{tpu_custom_call.1} parent=1 // pred_region
      %s1069 = ssub.s32 128, 128
      %1070 = vsyncadd [#allocation3], %s1069
      %s1072 = sshll.u32 [#allocation2], 4
      %s1073 = int_to_ptr.vmem [resolvable:$true] %s1072
      %1075 = dma.vmem_to_hbm [thread:$0]  %s1073, 128, %s8, [#allocation3]
    $region37: #{tpu_custom_call.1} parent=1 // pred_fallthru
      _
    // Predicated region
    $region38: #{tpu_custom_call.1} parent=1 // pred_check
      _
    $region39: #{tpu_custom_call.1} parent=1 // pred_check_branch
      %1077 = sbr.rel (0) target = $region41
    $region40: #{tpu_custom_call.1} parent=1 // pred_region
      %1078 = dma.done [#allocation3], 128
    $region41: #{tpu_custom_call.1} parent=1 // pred_fallthru
      _
    %1079 = vsyncpa [#allocation3], 1

</llo_original>
